<compile_context>
chip_gen: v7x
topology: tpu7x:2x2x1
jax: 0.10.0
libtpu: 0.0.40
codegen_flags: <defaults>
</compile_context>

<pallas_src>
import functools

import jax
import jax.numpy as jnp
from jax.experimental import pallas as pl
from jax.experimental.pallas import tpu as pltpu


# ----------------------------- Pallas kernel ---------------------------------
def _agcrn_cell_kernel(x_ref, s_ref, supp_ref, erep_ref, msum_ref,
                       wx_ref, wszr_ref, wsu_ref, bz_ref, br_ref, bu_ref,
                       h_ref, *, bt, n_nodes, hidden_dim, embed_dim,
                       num_cheb_rest):
    f32, bf16 = jnp.float32, jnp.bfloat16
    N, Do = n_nodes, hidden_dim
    ddo = embed_dim * Do
    rows = bt * N

    def cheb_expand(v):
        # v: (N, C) f32 -> (N, cheb_k*C) f32.  The k = 0 (identity) support
        # term is `v` itself; the remaining supports are precomputed constants.
        v16 = v.astype(bf16)
        pieces = [v] + [
            jnp.dot(supp_ref[k], v16, preferred_element_type=f32)
            for k in range(num_cheb_rest)]
        return jnp.concatenate(pieces, axis=-1)

    # Graph-convolved x / state blocks, rows ordered (batch, node).
    xgx = jnp.concatenate([cheb_expand(x_ref[b]) for b in range(bt)], axis=0)
    xgs = jnp.concatenate([cheb_expand(s_ref[b]) for b in range(bt)], axis=0)

    def tile_batch(v):                       # (N, C) -> (bt*N, C)
        return v if bt == 1 else jnp.concatenate([v] * bt, axis=0)

    erep_t = tile_batch(erep_ref[...])       # (rows, D*Do): E[n, d] repeated Do times
    bz_t = tile_batch(bz_ref[...])           # per-node biases (E @ bias_pool)
    br_t = tile_batch(br_ref[...])
    bu_t = tile_batch(bu_ref[...])
    msum = msum_ref[...]                     # (D*Do, Do) stacked identities
    state_flat = s_ref[...].reshape(rows, Do)

    # y[r, d*Do + o] = sum_{k,i} xg[r, k*C + i] * W[d, k, i, o]
    # One wide matmul covers the x-side contribution of z, r AND the candidate.
    yx = jnp.dot(xgx.astype(bf16), wx_ref[...],
                 preferred_element_type=f32)            # (rows, 3*D*Do): z|r|u
    ys = jnp.dot(xgs.astype(bf16), wszr_ref[...],
                 preferred_element_type=f32)            # (rows, 2*D*Do): z|r

    def embed_reduce(y_dco, bias_t):
        # out[r, o] = sum_d E[n(r), d] * y[r, d*Do + o] + bias[n(r), o]
        scaled = (y_dco * erep_t).astype(bf16)
        return jnp.dot(scaled, msum, preferred_element_type=f32) + bias_t

    z = jax.nn.sigmoid(embed_reduce(yx[:, :ddo] + ys[:, :ddo], bz_t))
    r = jax.nn.sigmoid(embed_reduce(yx[:, ddo:2 * ddo] + ys[:, ddo:2 * ddo],
                                    br_t))

    zs = z * state_flat                                  # candidate state input
    xgzs = jnp.concatenate(
        [cheb_expand(zs[b * N:(b + 1) * N, :]) for b in range(bt)], axis=0)
    yu = yx[:, 2 * ddo:] + jnp.dot(xgzs.astype(bf16), wsu_ref[...],
                                   preferred_element_type=f32)
    hc = jnp.tanh(embed_reduce(yu, bu_t))

    h = r * state_flat + (1.0 - r) * hc
    h_ref[...] = h.reshape(bt, N, Do)


# ----------------------------- wrapper ----------------------------------------
def _pick_batch_block(batch, n, di, do, cheb_k, embed_dim,
                      vmem_budget_bytes=6 << 20):
    """Largest batch block whose per-step working set stays within a small VMEM
    budget (leaves plenty of headroom on v7x's 64 MiB physical VMEM)."""
    ddo = embed_dim * do
    per_b = 4 * n * (2 * (di + 2 * do)            # double-buffered x/state/h
                     + cheb_k * (di + 2 * do)     # xgx, xgs, xgzs
                     + 6 * ddo                    # yx, ys, yu (+ scaled copies)
                     + 6 * do)                    # gates / bias tiles
    bt = max(1, min(batch, vmem_budget_bytes // max(per_b, 1)))
    while batch % bt:
        bt -= 1
    # Keep >= 2 grid steps (megacore on v7x) when the MXU row count stays large.
    if bt == batch and batch > 1 and batch % 2 == 0 and (bt // 2) * n >= 256:
        bt //= 2
    return bt


@functools.partial(jax.jit, static_argnames=("cheb_k", "batch_block"))
def agcrn_cell_pallas(x, state, node_emb, wg_pool, bg_pool, wu_pool, bu_pool,
                      cheb_k, batch_block=None):
    B, N, Di = x.shape
    Do = state.shape[-1]
    D = node_emb.shape[-1]
    Ci = Di + Do
    assert cheb_k >= 2, "AGCRNCell reference semantics require cheb_k >= 2"
    assert wg_pool.shape == (D, cheb_k, Ci, 2 * Do)
    assert wu_pool.shape == (D, cheb_k, Ci, Do)

    f32, bf16 = jnp.float32, jnp.bfloat16
    ddo = D * Do

    # ---- batch-invariant precompute (hoisted out of the kernel grid) --------
    # Adaptive adjacency + Chebyshev supports.  The identity support is dropped
    # here; the k = 0 term is applied inside the kernel as the input itself.
    A = jax.nn.softmax(jax.nn.relu(node_emb @ node_emb.T), axis=1)
    cheb = [A]
    t_prev2, t_prev1 = jnp.eye(N, dtype=f32), A
    for _ in range(2, cheb_k):
        t = 2.0 * A @ t_prev1 - t_prev2
        cheb.append(t)
        t_prev2, t_prev1 = t_prev1, t
    supports = jnp.stack(cheb, axis=0).astype(bf16)            # (K-1, N, N)

    # Per-node bias tables  E @ bias_pool (gate split into z / r halves).
    bz_n = (node_emb @ bg_pool[:, :Do]).astype(f32)            # (N, Do)
    br_n = (node_emb @ bg_pool[:, Do:]).astype(f32)
    bu_n = (node_emb @ bu_pool).astype(f32)

    # Weight pools flattened to lane-dense 2-D matrices, split
    #   * along the gate output into z / r (avoids an unaligned lane slice),
    #   * along the input channel into the x part and the state part
    #     (the x-side graph conv is shared by gate and candidate).
    # flat: (D, K, C, Co) -> (K*C, D*Co) with W_flat[k*C+i, d*Co+o] = W[d,k,i,o]
    def flat(wp):
        d_, k_, c_, co_ = wp.shape
        return jnp.transpose(wp, (1, 2, 0, 3)).reshape(k_ * c_, d_ * co_)

    wz, wr = wg_pool[..., :Do], wg_pool[..., Do:]
    wx_all = jnp.concatenate(
        [flat(wz[:, :, :Di, :]), flat(wr[:, :, :Di, :]),
         flat(wu_pool[:, :, :Di, :])], axis=1).astype(bf16)    # (K*Di, 3*D*Do)
    ws_zr = jnp.concatenate(
        [flat(wz[:, :, Di:, :]), flat(wr[:, :, Di:, :])],
        axis=1).astype(bf16)                                   # (K*Do, 2*D*Do)
    ws_u = flat(wu_pool[:, :, Di:, :]).astype(bf16)            # (K*Do, D*Do)

    # E replicated along the output lane groups + the D-reduction matrix
    # (D stacked Do x Do identities) so the embed-dim reduction is one matmul.
    erep = jnp.repeat(node_emb.astype(f32), Do, axis=1)        # (N, D*Do)
    msum = jnp.tile(jnp.eye(Do, dtype=f32), (D, 1)).astype(bf16)  # (D*Do, Do)

    bt = batch_block or _pick_batch_block(B, N, Di, Do, cheb_k, D)
    assert B % bt == 0

    kernel = functools.partial(
        _agcrn_cell_kernel, bt=bt, n_nodes=N, hidden_dim=Do, embed_dim=D,
        num_cheb_rest=cheb_k - 1)

    return pl.pallas_call(
        kernel,
        out_shape=jax.ShapeDtypeStruct((B, N, Do), f32),
        grid_spec=pltpu.PrefetchScalarGridSpec(
            num_scalar_prefetch=0,
            grid=(B // bt,),
            in_specs=[
                pl.BlockSpec((bt, N, Di), lambda g: (g, 0, 0)),          # x
                pl.BlockSpec((bt, N, Do), lambda g: (g, 0, 0)),          # state
                pl.BlockSpec((cheb_k - 1, N, N), lambda g: (0, 0, 0)),   # supports
                pl.BlockSpec((N, ddo), lambda g: (0, 0)),                # E repl.
                pl.BlockSpec((ddo, Do), lambda g: (0, 0)),               # D-sum mat
                pl.BlockSpec((cheb_k * Di, 3 * ddo), lambda g: (0, 0)),  # W x-side
                pl.BlockSpec((cheb_k * Do, 2 * ddo), lambda g: (0, 0)),  # W state z|r
                pl.BlockSpec((cheb_k * Do, ddo), lambda g: (0, 0)),      # W state upd
                pl.BlockSpec((N, Do), lambda g: (0, 0)),                 # bias z
                pl.BlockSpec((N, Do), lambda g: (0, 0)),                 # bias r
                pl.BlockSpec((N, Do), lambda g: (0, 0)),                 # bias u
            ],
            out_specs=pl.BlockSpec((bt, N, Do), lambda g: (g, 0, 0)),
        ),
        compiler_params=pltpu.CompilerParams(
            dimension_semantics=("parallel",)),
    )(x, state, supports, erep, msum, wx_all, ws_zr, ws_u, bz_n, br_n, bu_n)


# ----------------------- pure-JAX reference (mirrors PyTorch) -----------------
def _avwgcn_ref(x, node_emb, w_pool, b_pool, cheb_k):
    N = node_emb.shape[0]
    A = jax.nn.softmax(jax.nn.relu(node_emb @ node_emb.T), axis=1)
    supp = [jnp.eye(N, dtype=x.dtype), A]
    for _ in range(2, cheb_k):
        supp.append(2.0 * A @ supp[-1] - supp[-2])
    supports = jnp.stack(supp[:cheb_k], axis=0)
    weights = jnp.einsum('nd,dkio->nkio', node_emb, w_pool)
    bias = node_emb @ b_pool
    x_g = jnp.einsum('knm,bmc->bknc', supports, x)
    x_g = jnp.transpose(x_g, (0, 2, 1, 3))
    return jnp.einsum('bnki,nkio->bno', x_g, weights) + bias


def agcrn_cell_ref(x, state, node_emb, wg, bg, wu, bu, cheb_k, hidden_dim):
    xs = jnp.concatenate([x, state], axis=-1)
    z_r = jax.nn.sigmoid(_avwgcn_ref(xs, node_emb, wg, bg, cheb_k))
    z, r = z_r[..., :hidden_dim], z_r[..., hidden_dim:]
    cand = jnp.concatenate([x, z * state], axis=-1)
    hc = jnp.tanh(_avwgcn_ref(cand, node_emb, wu, bu, cheb_k))
    return r * state + (1.0 - r) * hc


if __name__ == "__main__":
    B, N, Di, Do, K, D = 2, 16, 4, 32, 3, 8   # batch, nodes, dim_in, hidden, cheb_k, embed_dim
    Ci = Di + Do
    key = jax.random.PRNGKey(0)
    ks = jax.random.split(key, 7)
    x = jax.random.normal(ks[0], (B, N, Di), jnp.float32)
    state = jax.random.normal(ks[1], (B, N, Do), jnp.float32)
    node_emb = jax.random.normal(ks[2], (N, D), jnp.float32) * 0.5
    # deterministic synthetic parameters (shapes from AVWGCN.__init__)
    wg = jax.random.normal(ks[3], (D, K, Ci, 2 * Do), jnp.float32) * 0.1
    bg = jax.random.normal(ks[4], (D, 2 * Do), jnp.float32) * 0.1
    wu = jax.random.normal(ks[5], (D, K, Ci, Do), jnp.float32) * 0.1
    bu = jax.random.normal(ks[6], (D, Do), jnp.float32) * 0.1

    h = agcrn_cell_pallas(x, state, node_emb, wg, bg, wu, bu, cheb_k=K)
    h = jax.block_until_ready(h)

    h_ref = agcrn_cell_ref(x, state, node_emb, wg, bg, wu, bu, K, Do)
    assert h.shape == (B, N, Do)
    # bf16 MXU operands with f32 accumulation (per perf guidance) -> loosened
    # tolerance relative to the pure-f32 reference.
    err = float(jnp.max(jnp.abs(h - h_ref)))
    assert jnp.allclose(h, h_ref, atol=5e-2, rtol=5e-2), err
    print("KERNEL_OK")
</pallas_src>

<mosaic_0001>
module attributes {stable_mosaic.version = 11 : i64} {
  func.func @_agcrn_cell_kernel(%arg0: i32, %arg1: memref<2x16x4xf32, #tpu.memory_space<vmem>>, %arg2: memref<2x16x32xf32, #tpu.memory_space<vmem>>, %arg3: memref<2x16x16xbf16, #tpu.memory_space<vmem>>, %arg4: memref<16x256xf32, #tpu.memory_space<vmem>>, %arg5: memref<256x32xbf16, #tpu.memory_space<vmem>>, %arg6: memref<12x768xbf16, #tpu.memory_space<vmem>>, %arg7: memref<96x512xbf16, #tpu.memory_space<vmem>>, %arg8: memref<96x256xbf16, #tpu.memory_space<vmem>>, %arg9: memref<16x32xf32, #tpu.memory_space<vmem>>, %arg10: memref<16x32xf32, #tpu.memory_space<vmem>>, %arg11: memref<16x32xf32, #tpu.memory_space<vmem>>, %arg12: memref<2x16x32xf32, #tpu.memory_space<vmem>>) attributes {dimension_semantics = [#tpu.dimension_semantics<parallel>], iteration_bounds = array<i64: 1>, scalar_prefetch = 0 : i64, scratch_operands = 0 : i64, tpu.core_type = #tpu.core_type<tc>, window_params = [{transform_indices = @transform_0, window_bounds = array<i64: 2, 16, 4>}, {transform_indices = @transform_1, window_bounds = array<i64: 2, 16, 32>}, {pipeline_mode = #tpu.pipeline_mode<synchronous>, transform_indices = @transform_2, window_bounds = array<i64: 2, 16, 16>}, {pipeline_mode = #tpu.pipeline_mode<synchronous>, transform_indices = @transform_3, window_bounds = array<i64: 16, 256>}, {pipeline_mode = #tpu.pipeline_mode<synchronous>, transform_indices = @transform_4, window_bounds = array<i64: 256, 32>}, {pipeline_mode = #tpu.pipeline_mode<synchronous>, transform_indices = @transform_5, window_bounds = array<i64: 12, 768>}, {pipeline_mode = #tpu.pipeline_mode<synchronous>, transform_indices = @transform_6, window_bounds = array<i64: 96, 512>}, {pipeline_mode = #tpu.pipeline_mode<synchronous>, transform_indices = @transform_7, window_bounds = array<i64: 96, 256>}, {pipeline_mode = #tpu.pipeline_mode<synchronous>, transform_indices = @transform_8, window_bounds = array<i64: 16, 32>}, {pipeline_mode = #tpu.pipeline_mode<synchronous>, transform_indices = @transform_9, window_bounds = array<i64: 16, 32>}, {pipeline_mode = #tpu.pipeline_mode<synchronous>, transform_indices = @transform_10, window_bounds = array<i64: 16, 32>}, {transform_indices = @transform_11, window_bounds = array<i64: 2, 16, 32>}]} {
    %c0 = arith.constant 0 : index
    %c0_0 = arith.constant 0 : index
    %c0_1 = arith.constant 0 : index
    %0 = vector.load %arg1[%c0, %c0_0, %c0_1] : memref<2x16x4xf32, #tpu.memory_space<vmem>>, vector<1x16x4xf32>
    %1 = vector.shape_cast %0 : vector<1x16x4xf32> to vector<16x4xf32>
    %2 = arith.truncf %1 : vector<16x4xf32> to vector<16x4xbf16>
    %c0_2 = arith.constant 0 : index
    %c0_3 = arith.constant 0 : index
    %c0_4 = arith.constant 0 : index
    %3 = vector.load %arg3[%c0_2, %c0_3, %c0_4] : memref<2x16x16xbf16, #tpu.memory_space<vmem>>, vector<1x16x16xbf16>
    %4 = vector.shape_cast %3 : vector<1x16x16xbf16> to vector<16x16xbf16>
    %cst = arith.constant dense<0.000000e+00> : vector<16x4xf32>
    %5 = tpu.matmul %4, %2, %cst {dimension_numbers = #tpu.dot_dimension_numbers<[1], [0], [0], [1], [0, 0, 1, 1], [], []>} : vector<16x16xbf16>, vector<16x4xbf16>, vector<16x4xf32> -> vector<16x4xf32>
    %c1 = arith.constant 1 : index
    %c0_5 = arith.constant 0 : index
    %c0_6 = arith.constant 0 : index
    %6 = vector.load %arg3[%c1, %c0_5, %c0_6] : memref<2x16x16xbf16, #tpu.memory_space<vmem>>, vector<1x16x16xbf16>
    %7 = vector.shape_cast %6 : vector<1x16x16xbf16> to vector<16x16xbf16>
    %cst_7 = arith.constant dense<0.000000e+00> : vector<16x4xf32>
    %8 = tpu.matmul %7, %2, %cst_7 {dimension_numbers = #tpu.dot_dimension_numbers<[1], [0], [0], [1], [0, 0, 1, 1], [], []>} : vector<16x16xbf16>, vector<16x4xbf16>, vector<16x4xf32> -> vector<16x4xf32>
    %9 = tpu.concatenate %1, %5, %8 in 1 : vector<16x4xf32>, vector<16x4xf32>, vector<16x4xf32> -> vector<16x12xf32>
    %c1_8 = arith.constant 1 : index
    %c0_9 = arith.constant 0 : index
    %c0_10 = arith.constant 0 : index
    %10 = vector.load %arg1[%c1_8, %c0_9, %c0_10] : memref<2x16x4xf32, #tpu.memory_space<vmem>>, vector<1x16x4xf32>
    %11 = vector.shape_cast %10 : vector<1x16x4xf32> to vector<16x4xf32>
    %12 = arith.truncf %11 : vector<16x4xf32> to vector<16x4xbf16>
    %c0_11 = arith.constant 0 : index
    %c0_12 = arith.constant 0 : index
    %c0_13 = arith.constant 0 : index
    %13 = vector.load %arg3[%c0_11, %c0_12, %c0_13] : memref<2x16x16xbf16, #tpu.memory_space<vmem>>, vector<1x16x16xbf16>
    %14 = vector.shape_cast %13 : vector<1x16x16xbf16> to vector<16x16xbf16>
    %cst_14 = arith.constant dense<0.000000e+00> : vector<16x4xf32>
    %15 = tpu.matmul %14, %12, %cst_14 {dimension_numbers = #tpu.dot_dimension_numbers<[1], [0], [0], [1], [0, 0, 1, 1], [], []>} : vector<16x16xbf16>, vector<16x4xbf16>, vector<16x4xf32> -> vector<16x4xf32>
    %c1_15 = arith.constant 1 : index
    %c0_16 = arith.constant 0 : index
    %c0_17 = arith.constant 0 : index
    %16 = vector.load %arg3[%c1_15, %c0_16, %c0_17] : memref<2x16x16xbf16, #tpu.memory_space<vmem>>, vector<1x16x16xbf16>
    %17 = vector.shape_cast %16 : vector<1x16x16xbf16> to vector<16x16xbf16>
    %cst_18 = arith.constant dense<0.000000e+00> : vector<16x4xf32>
    %18 = tpu.matmul %17, %12, %cst_18 {dimension_numbers = #tpu.dot_dimension_numbers<[1], [0], [0], [1], [0, 0, 1, 1], [], []>} : vector<16x16xbf16>, vector<16x4xbf16>, vector<16x4xf32> -> vector<16x4xf32>
    %19 = tpu.concatenate %11, %15, %18 in 1 : vector<16x4xf32>, vector<16x4xf32>, vector<16x4xf32> -> vector<16x12xf32>
    %20 = tpu.concatenate %9, %19 in 0 : vector<16x12xf32>, vector<16x12xf32> -> vector<32x12xf32>
    %c0_19 = arith.constant 0 : index
    %c0_20 = arith.constant 0 : index
    %c0_21 = arith.constant 0 : index
    %21 = vector.load %arg2[%c0_19, %c0_20, %c0_21] : memref<2x16x32xf32, #tpu.memory_space<vmem>>, vector<1x16x32xf32>
    %22 = vector.shape_cast %21 : vector<1x16x32xf32> to vector<16x32xf32>
    %23 = arith.truncf %22 : vector<16x32xf32> to vector<16x32xbf16>
    %c0_22 = arith.constant 0 : index
    %c0_23 = arith.constant 0 : index
    %c0_24 = arith.constant 0 : index
    %24 = vector.load %arg3[%c0_22, %c0_23, %c0_24] : memref<2x16x16xbf16, #tpu.memory_space<vmem>>, vector<1x16x16xbf16>
    %25 = vector.shape_cast %24 : vector<1x16x16xbf16> to vector<16x16xbf16>
    %cst_25 = arith.constant dense<0.000000e+00> : vector<16x32xf32>
    %26 = tpu.matmul %25, %23, %cst_25 {dimension_numbers = #tpu.dot_dimension_numbers<[1], [0], [0], [1], [0, 0, 1, 1], [], []>} : vector<16x16xbf16>, vector<16x32xbf16>, vector<16x32xf32> -> vector<16x32xf32>
    %c1_26 = arith.constant 1 : index
    %c0_27 = arith.constant 0 : index
    %c0_28 = arith.constant 0 : index
    %27 = vector.load %arg3[%c1_26, %c0_27, %c0_28] : memref<2x16x16xbf16, #tpu.memory_space<vmem>>, vector<1x16x16xbf16>
    %28 = vector.shape_cast %27 : vector<1x16x16xbf16> to vector<16x16xbf16>
    %cst_29 = arith.constant dense<0.000000e+00> : vector<16x32xf32>
    %29 = tpu.matmul %28, %23, %cst_29 {dimension_numbers = #tpu.dot_dimension_numbers<[1], [0], [0], [1], [0, 0, 1, 1], [], []>} : vector<16x16xbf16>, vector<16x32xbf16>, vector<16x32xf32> -> vector<16x32xf32>
    %30 = tpu.concatenate %22, %26, %29 in 1 : vector<16x32xf32>, vector<16x32xf32>, vector<16x32xf32> -> vector<16x96xf32>
    %c1_30 = arith.constant 1 : index
    %c0_31 = arith.constant 0 : index
    %c0_32 = arith.constant 0 : index
    %31 = vector.load %arg2[%c1_30, %c0_31, %c0_32] : memref<2x16x32xf32, #tpu.memory_space<vmem>>, vector<1x16x32xf32>
    %32 = vector.shape_cast %31 : vector<1x16x32xf32> to vector<16x32xf32>
    %33 = arith.truncf %32 : vector<16x32xf32> to vector<16x32xbf16>
    %c0_33 = arith.constant 0 : index
    %c0_34 = arith.constant 0 : index
    %c0_35 = arith.constant 0 : index
    %34 = vector.load %arg3[%c0_33, %c0_34, %c0_35] : memref<2x16x16xbf16, #tpu.memory_space<vmem>>, vector<1x16x16xbf16>
    %35 = vector.shape_cast %34 : vector<1x16x16xbf16> to vector<16x16xbf16>
    %cst_36 = arith.constant dense<0.000000e+00> : vector<16x32xf32>
    %36 = tpu.matmul %35, %33, %cst_36 {dimension_numbers = #tpu.dot_dimension_numbers<[1], [0], [0], [1], [0, 0, 1, 1], [], []>} : vector<16x16xbf16>, vector<16x32xbf16>, vector<16x32xf32> -> vector<16x32xf32>
    %c1_37 = arith.constant 1 : index
    %c0_38 = arith.constant 0 : index
    %c0_39 = arith.constant 0 : index
    %37 = vector.load %arg3[%c1_37, %c0_38, %c0_39] : memref<2x16x16xbf16, #tpu.memory_space<vmem>>, vector<1x16x16xbf16>
    %38 = vector.shape_cast %37 : vector<1x16x16xbf16> to vector<16x16xbf16>
    %cst_40 = arith.constant dense<0.000000e+00> : vector<16x32xf32>
    %39 = tpu.matmul %38, %33, %cst_40 {dimension_numbers = #tpu.dot_dimension_numbers<[1], [0], [0], [1], [0, 0, 1, 1], [], []>} : vector<16x16xbf16>, vector<16x32xbf16>, vector<16x32xf32> -> vector<16x32xf32>
    %40 = tpu.concatenate %32, %36, %39 in 1 : vector<16x32xf32>, vector<16x32xf32>, vector<16x32xf32> -> vector<16x96xf32>
    %41 = tpu.concatenate %30, %40 in 0 : vector<16x96xf32>, vector<16x96xf32> -> vector<32x96xf32>
    %c0_41 = arith.constant 0 : index
    %c0_42 = arith.constant 0 : index
    %42 = vector.load %arg4[%c0_41, %c0_42] : memref<16x256xf32, #tpu.memory_space<vmem>>, vector<16x256xf32>
    %43 = tpu.concatenate %42, %42 in 0 : vector<16x256xf32>, vector<16x256xf32> -> vector<32x256xf32>
    %c0_43 = arith.constant 0 : index
    %c0_44 = arith.constant 0 : index
    %44 = vector.load %arg9[%c0_43, %c0_44] : memref<16x32xf32, #tpu.memory_space<vmem>>, vector<16x32xf32>
    %45 = tpu.concatenate %44, %44 in 0 : vector<16x32xf32>, vector<16x32xf32> -> vector<32x32xf32>
    %c0_45 = arith.constant 0 : index
    %c0_46 = arith.constant 0 : index
    %46 = vector.load %arg10[%c0_45, %c0_46] : memref<16x32xf32, #tpu.memory_space<vmem>>, vector<16x32xf32>
    %47 = tpu.concatenate %46, %46 in 0 : vector<16x32xf32>, vector<16x32xf32> -> vector<32x32xf32>
    %c0_47 = arith.constant 0 : index
    %c0_48 = arith.constant 0 : index
    %48 = vector.load %arg11[%c0_47, %c0_48] : memref<16x32xf32, #tpu.memory_space<vmem>>, vector<16x32xf32>
    %49 = tpu.concatenate %48, %48 in 0 : vector<16x32xf32>, vector<16x32xf32> -> vector<32x32xf32>
    %c0_49 = arith.constant 0 : index
    %c0_50 = arith.constant 0 : index
    %50 = vector.load %arg5[%c0_49, %c0_50] : memref<256x32xbf16, #tpu.memory_space<vmem>>, vector<256x32xbf16>
    %c0_51 = arith.constant 0 : index
    %c0_52 = arith.constant 0 : index
    %c0_53 = arith.constant 0 : index
    %51 = vector.load %arg2[%c0_51, %c0_52, %c0_53] : memref<2x16x32xf32, #tpu.memory_space<vmem>>, vector<2x16x32xf32>
    %52 = vector.shape_cast %51 : vector<2x16x32xf32> to vector<32x32xf32>
    %53 = arith.truncf %20 : vector<32x12xf32> to vector<32x12xbf16>
    %c0_54 = arith.constant 0 : index
    %c0_55 = arith.constant 0 : index
    %54 = vector.load %arg6[%c0_54, %c0_55] : memref<12x768xbf16, #tpu.memory_space<vmem>>, vector<12x768xbf16>
    %cst_56 = arith.constant dense<0.000000e+00> : vector<32x768xf32>
    %55 = tpu.matmul %53, %54, %cst_56 {dimension_numbers = #tpu.dot_dimension_numbers<[1], [0], [0], [1], [0, 0, 1, 1], [], []>} : vector<32x12xbf16>, vector<12x768xbf16>, vector<32x768xf32> -> vector<32x768xf32>
    %56 = arith.truncf %41 : vector<32x96xf32> to vector<32x96xbf16>
    %c0_57 = arith.constant 0 : index
    %c0_58 = arith.constant 0 : index
    %57 = vector.load %arg7[%c0_57, %c0_58] : memref<96x512xbf16, #tpu.memory_space<vmem>>, vector<96x512xbf16>
    %cst_59 = arith.constant dense<0.000000e+00> : vector<32x512xf32>
    %58 = tpu.matmul %56, %57, %cst_59 {dimension_numbers = #tpu.dot_dimension_numbers<[1], [0], [0], [1], [0, 0, 1, 1], [], []>} : vector<32x96xbf16>, vector<96x512xbf16>, vector<32x512xf32> -> vector<32x512xf32>
    %59 = vector.extract_strided_slice %55 {offsets = [0, 0], sizes = [32, 256], strides = [1, 1]} : vector<32x768xf32> to vector<32x256xf32>
    %60 = vector.extract_strided_slice %58 {offsets = [0, 0], sizes = [32, 256], strides = [1, 1]} : vector<32x512xf32> to vector<32x256xf32>
    %61 = arith.addf %59, %60 : vector<32x256xf32>
    %62 = arith.mulf %61, %43 : vector<32x256xf32>
    %63 = arith.truncf %62 : vector<32x256xf32> to vector<32x256xbf16>
    %cst_60 = arith.constant dense<0.000000e+00> : vector<32x32xf32>
    %64 = tpu.matmul %63, %50, %cst_60 {dimension_numbers = #tpu.dot_dimension_numbers<[1], [0], [0], [1], [0, 0, 1, 1], [], []>} : vector<32x256xbf16>, vector<256x32xbf16>, vector<32x32xf32> -> vector<32x32xf32>
    %65 = arith.addf %64, %45 : vector<32x32xf32>
    %66 = arith.negf %65 : vector<32x32xf32>
    %67 = math.exp %66 : vector<32x32xf32>
    %cst_61 = arith.constant 1.000000e+00 : f32
    %68 = vector.broadcast %cst_61 : f32 to vector<32x32xf32>
    %69 = arith.addf %68, %67 : vector<32x32xf32>
    %70 = arith.divf %68, %69 : vector<32x32xf32>
    %71 = vector.extract_strided_slice %55 {offsets = [0, 256], sizes = [32, 256], strides = [1, 1]} : vector<32x768xf32> to vector<32x256xf32>
    %72 = vector.extract_strided_slice %58 {offsets = [0, 256], sizes = [32, 256], strides = [1, 1]} : vector<32x512xf32> to vector<32x256xf32>
    %73 = arith.addf %71, %72 : vector<32x256xf32>
    %74 = arith.mulf %73, %43 : vector<32x256xf32>
    %75 = arith.truncf %74 : vector<32x256xf32> to vector<32x256xbf16>
    %cst_62 = arith.constant dense<0.000000e+00> : vector<32x32xf32>
    %76 = tpu.matmul %75, %50, %cst_62 {dimension_numbers = #tpu.dot_dimension_numbers<[1], [0], [0], [1], [0, 0, 1, 1], [], []>} : vector<32x256xbf16>, vector<256x32xbf16>, vector<32x32xf32> -> vector<32x32xf32>
    %77 = arith.addf %76, %47 : vector<32x32xf32>
    %78 = arith.negf %77 : vector<32x32xf32>
    %79 = math.exp %78 : vector<32x32xf32>
    %cst_63 = arith.constant 1.000000e+00 : f32
    %80 = vector.broadcast %cst_63 : f32 to vector<32x32xf32>
    %81 = arith.addf %80, %79 : vector<32x32xf32>
    %82 = arith.divf %80, %81 : vector<32x32xf32>
    %83 = arith.mulf %70, %52 : vector<32x32xf32>
    %84 = vector.extract_strided_slice %83 {offsets = [0, 0], sizes = [16, 32], strides = [1, 1]} : vector<32x32xf32> to vector<16x32xf32>
    %85 = arith.truncf %84 : vector<16x32xf32> to vector<16x32xbf16>
    %c0_64 = arith.constant 0 : index
    %c0_65 = arith.constant 0 : index
    %c0_66 = arith.constant 0 : index
    %86 = vector.load %arg3[%c0_64, %c0_65, %c0_66] : memref<2x16x16xbf16, #tpu.memory_space<vmem>>, vector<1x16x16xbf16>
    %87 = vector.shape_cast %86 : vector<1x16x16xbf16> to vector<16x16xbf16>
    %cst_67 = arith.constant dense<0.000000e+00> : vector<16x32xf32>
    %88 = tpu.matmul %87, %85, %cst_67 {dimension_numbers = #tpu.dot_dimension_numbers<[1], [0], [0], [1], [0, 0, 1, 1], [], []>} : vector<16x16xbf16>, vector<16x32xbf16>, vector<16x32xf32> -> vector<16x32xf32>
    %c1_68 = arith.constant 1 : index
    %c0_69 = arith.constant 0 : index
    %c0_70 = arith.constant 0 : index
    %89 = vector.load %arg3[%c1_68, %c0_69, %c0_70] : memref<2x16x16xbf16, #tpu.memory_space<vmem>>, vector<1x16x16xbf16>
    %90 = vector.shape_cast %89 : vector<1x16x16xbf16> to vector<16x16xbf16>
    %cst_71 = arith.constant dense<0.000000e+00> : vector<16x32xf32>
    %91 = tpu.matmul %90, %85, %cst_71 {dimension_numbers = #tpu.dot_dimension_numbers<[1], [0], [0], [1], [0, 0, 1, 1], [], []>} : vector<16x16xbf16>, vector<16x32xbf16>, vector<16x32xf32> -> vector<16x32xf32>
    %92 = tpu.concatenate %84, %88, %91 in 1 : vector<16x32xf32>, vector<16x32xf32>, vector<16x32xf32> -> vector<16x96xf32>
    %93 = vector.extract_strided_slice %83 {offsets = [16, 0], sizes = [16, 32], strides = [1, 1]} : vector<32x32xf32> to vector<16x32xf32>
    %94 = arith.truncf %93 : vector<16x32xf32> to vector<16x32xbf16>
    %c0_72 = arith.constant 0 : index
    %c0_73 = arith.constant 0 : index
    %c0_74 = arith.constant 0 : index
    %95 = vector.load %arg3[%c0_72, %c0_73, %c0_74] : memref<2x16x16xbf16, #tpu.memory_space<vmem>>, vector<1x16x16xbf16>
    %96 = vector.shape_cast %95 : vector<1x16x16xbf16> to vector<16x16xbf16>
    %cst_75 = arith.constant dense<0.000000e+00> : vector<16x32xf32>
    %97 = tpu.matmul %96, %94, %cst_75 {dimension_numbers = #tpu.dot_dimension_numbers<[1], [0], [0], [1], [0, 0, 1, 1], [], []>} : vector<16x16xbf16>, vector<16x32xbf16>, vector<16x32xf32> -> vector<16x32xf32>
    %c1_76 = arith.constant 1 : index
    %c0_77 = arith.constant 0 : index
    %c0_78 = arith.constant 0 : index
    %98 = vector.load %arg3[%c1_76, %c0_77, %c0_78] : memref<2x16x16xbf16, #tpu.memory_space<vmem>>, vector<1x16x16xbf16>
    %99 = vector.shape_cast %98 : vector<1x16x16xbf16> to vector<16x16xbf16>
    %cst_79 = arith.constant dense<0.000000e+00> : vector<16x32xf32>
    %100 = tpu.matmul %99, %94, %cst_79 {dimension_numbers = #tpu.dot_dimension_numbers<[1], [0], [0], [1], [0, 0, 1, 1], [], []>} : vector<16x16xbf16>, vector<16x32xbf16>, vector<16x32xf32> -> vector<16x32xf32>
    %101 = tpu.concatenate %93, %97, %100 in 1 : vector<16x32xf32>, vector<16x32xf32>, vector<16x32xf32> -> vector<16x96xf32>
    %102 = tpu.concatenate %92, %101 in 0 : vector<16x96xf32>, vector<16x96xf32> -> vector<32x96xf32>
    %103 = vector.extract_strided_slice %55 {offsets = [0, 512], sizes = [32, 256], strides = [1, 1]} : vector<32x768xf32> to vector<32x256xf32>
    %104 = arith.truncf %102 : vector<32x96xf32> to vector<32x96xbf16>
    %c0_80 = arith.constant 0 : index
    %c0_81 = arith.constant 0 : index
    %105 = vector.load %arg8[%c0_80, %c0_81] : memref<96x256xbf16, #tpu.memory_space<vmem>>, vector<96x256xbf16>
    %cst_82 = arith.constant dense<0.000000e+00> : vector<32x256xf32>
    %106 = tpu.matmul %104, %105, %cst_82 {dimension_numbers = #tpu.dot_dimension_numbers<[1], [0], [0], [1], [0, 0, 1, 1], [], []>} : vector<32x96xbf16>, vector<96x256xbf16>, vector<32x256xf32> -> vector<32x256xf32>
    %107 = arith.addf %103, %106 : vector<32x256xf32>
    %108 = arith.mulf %107, %43 : vector<32x256xf32>
    %109 = arith.truncf %108 : vector<32x256xf32> to vector<32x256xbf16>
    %cst_83 = arith.constant dense<0.000000e+00> : vector<32x32xf32>
    %110 = tpu.matmul %109, %50, %cst_83 {dimension_numbers = #tpu.dot_dimension_numbers<[1], [0], [0], [1], [0, 0, 1, 1], [], []>} : vector<32x256xbf16>, vector<256x32xbf16>, vector<32x32xf32> -> vector<32x32xf32>
    %111 = arith.addf %110, %49 : vector<32x32xf32>
    %112 = math.tanh %111 : vector<32x32xf32>
    %113 = arith.mulf %82, %52 : vector<32x32xf32>
    %cst_84 = arith.constant 1.000000e+00 : f32
    %114 = vector.broadcast %cst_84 : f32 to vector<32x32xf32>
    %115 = arith.subf %114, %82 : vector<32x32xf32>
    %116 = arith.mulf %115, %112 : vector<32x32xf32>
    %117 = arith.addf %113, %116 : vector<32x32xf32>
    %118 = vector.shape_cast %117 : vector<32x32xf32> to vector<2x16x32xf32>
    %c0_85 = arith.constant 0 : index
    %c0_86 = arith.constant 0 : index
    %c0_87 = arith.constant 0 : index
    %119 = vector.load %arg12[%c0_85, %c0_86, %c0_87] : memref<2x16x32xf32, #tpu.memory_space<vmem>>, vector<2x16x32xf32>
    tpu.vector_store %arg12[%c0_85, %c0_86, %c0_87], %118 {strides = array<i32>} : memref<2x16x32xf32, #tpu.memory_space<vmem>>, vector<2x16x32xf32>,
    return
  }
  func.func @transform_0(%arg0: i32) -> (i32, i32, i32) {
    %c0_i32 = arith.constant 0 : i32
    %c0_i32_0 = arith.constant 0 : i32
    %c0_i32_1 = arith.constant 0 : i32
    return %arg0, %c0_i32, %c0_i32_0 : i32, i32, i32
  }
  func.func @transform_1(%arg0: i32) -> (i32, i32, i32) {
    %c0_i32 = arith.constant 0 : i32
    %c0_i32_0 = arith.constant 0 : i32
    %c0_i32_1 = arith.constant 0 : i32
    return %arg0, %c0_i32, %c0_i32_0 : i32, i32, i32
  }
  func.func @transform_2(%arg0: i32) -> (i32, i32, i32) {
    %c0_i32 = arith.constant 0 : i32
    %c0_i32_0 = arith.constant 0 : i32
    %c0_i32_1 = arith.constant 0 : i32
    %c0_i32_2 = arith.constant 0 : i32
    return %c0_i32, %c0_i32_0, %c0_i32_1 : i32, i32, i32
  }
  func.func @transform_3(%arg0: i32) -> (i32, i32) {
    %c0_i32 = arith.constant 0 : i32
    %c0_i32_0 = arith.constant 0 : i32
    %c0_i32_1 = arith.constant 0 : i32
    return %c0_i32, %c0_i32_0 : i32, i32
  }
  func.func @transform_4(%arg0: i32) -> (i32, i32) {
    %c0_i32 = arith.constant 0 : i32
    %c0_i32_0 = arith.constant 0 : i32
    %c0_i32_1 = arith.constant 0 : i32
    return %c0_i32, %c0_i32_0 : i32, i32
  }
  func.func @transform_5(%arg0: i32) -> (i32, i32) {
    %c0_i32 = arith.constant 0 : i32
    %c0_i32_0 = arith.constant 0 : i32
    %c0_i32_1 = arith.constant 0 : i32
    return %c0_i32, %c0_i32_0 : i32, i32
  }
  func.func @transform_6(%arg0: i32) -> (i32, i32) {
    %c0_i32 = arith.constant 0 : i32
    %c0_i32_0 = arith.constant 0 : i32
    %c0_i32_1 = arith.constant 0 : i32
    return %c0_i32, %c0_i32_0 : i32, i32
  }
  func.func @transform_7(%arg0: i32) -> (i32, i32) {
    %c0_i32 = arith.constant 0 : i32
    %c0_i32_0 = arith.constant 0 : i32
    %c0_i32_1 = arith.constant 0 : i32
    return %c0_i32, %c0_i32_0 : i32, i32
  }
  func.func @transform_8(%arg0: i32) -> (i32, i32) {
    %c0_i32 = arith.constant 0 : i32
    %c0_i32_0 = arith.constant 0 : i32
    %c0_i32_1 = arith.constant 0 : i32
    return %c0_i32, %c0_i32_0 : i32, i32
  }
  func.func @transform_9(%arg0: i32) -> (i32, i32) {
    %c0_i32 = arith.constant 0 : i32
    %c0_i32_0 = arith.constant 0 : i32
    %c0_i32_1 = arith.constant 0 : i32
    return %c0_i32, %c0_i32_0 : i32, i32
  }
  func.func @transform_10(%arg0: i32) -> (i32, i32) {
    %c0_i32 = arith.constant 0 : i32
    %c0_i32_0 = arith.constant 0 : i32
    %c0_i32_1 = arith.constant 0 : i32
    return %c0_i32, %c0_i32_0 : i32, i32
  }
  func.func @transform_11(%arg0: i32) -> (i32, i32, i32) {
    %c0_i32 = arith.constant 0 : i32
    %c0_i32_0 = arith.constant 0 : i32
    %c0_i32_1 = arith.constant 0 : i32
    return %arg0, %c0_i32, %c0_i32_0 : i32, i32, i32
  }
}

</mosaic_0001>

<llo_original>
// kernel: agcrn_cell_pallas.1
$region0: #{agcrn_cell_pallas.1}
  #allocation0 [shape = 'u32[]', space=smem, size = 0x4, offset = 0x4, fixed_abs, tag = 'smem constant byte address 0x4 - core index']
  #allocation1 [shape = 'u32[144,128]{1,0:T(1,128)}', space=vmem, size = 0x12000, scoped, tag = 'internal scratch']
  %s0 = inlined_call_operand.vmem [shape: f32[2,16,4], index: 0, kind: input, shape index: {}]
  %s1 = inlined_call_operand.vmem [shape: f32[2,16,32], index: 1, kind: input, shape index: {}]
  %s2 = inlined_call_operand.vmem [shape: bf16[2,16,16], index: 2, kind: input, shape index: {}]
  %s3 = inlined_call_operand.vmem [shape: f32[16,256], index: 3, kind: input, shape index: {}]
  %s4 = inlined_call_operand.vmem [shape: bf16[256,32], index: 4, kind: input, shape index: {}]
  %s5 = inlined_call_operand.vmem [shape: bf16[12,768], index: 5, kind: input, shape index: {}]
  %s6 = inlined_call_operand.vmem [shape: bf16[96,512], index: 6, kind: input, shape index: {}]
  %s7 = inlined_call_operand.vmem [shape: bf16[96,256], index: 7, kind: input, shape index: {}]
  %s8 = inlined_call_operand.vmem [shape: f32[16,32], index: 8, kind: input, shape index: {}]
  %s9 = inlined_call_operand.vmem [shape: f32[16,32], index: 9, kind: input, shape index: {}]
  %s10 = inlined_call_operand.vmem [shape: f32[16,32], index: 10, kind: input, shape index: {}]
  %s11 = inlined_call_operand.hbm [shape: f32[2,16,32], index: 11, kind: output, shape index: {}]
  %s12 = sld [smem:[#allocation0]]
  $region54: #{agcrn_cell_pallas.1} parent=0
    _
  %s14 = ssub.s32 1, %s12
  %s15 = scalar_select 0, %s14, %s12
  $region1: #{agcrn_cell_pallas.1} parent=0
    #allocation2 [shape = 'u8[16384]{0}', space=vmem, size = 0x4000, scoped, tag = 'output window, operand 0, single buffered']
    #allocation3 [shape = 's32[1]{0}', space=sflag, size = 0x4, scoped, tag = 'scoped memory for agcrn_cell_pallas.1']
    %16 = vsyncpa [#allocation3], 0
    // Predicated region
    $region2: #{agcrn_cell_pallas.1} parent=1 // pred_check
      _
    $region3: #{agcrn_cell_pallas.1} parent=1 // pred_check_branch
      %18 = sbr.rel (0) target = $region5
    $region4: #{agcrn_cell_pallas.1} parent=1 // pred_region
      _
    $region5: #{agcrn_cell_pallas.1} parent=1 // pred_fallthru
      _
    // Predicated region
    $region6: #{agcrn_cell_pallas.1} parent=1 // pred_check
      _
    $region7: #{agcrn_cell_pallas.1} parent=1 // pred_check_branch
      %20 = sbr.rel (0) target = $region9
    $region8: #{agcrn_cell_pallas.1} parent=1 // pred_region
      _
    $region9: #{agcrn_cell_pallas.1} parent=1 // pred_fallthru
      _
    // Predicated region
    $region10: #{agcrn_cell_pallas.1} parent=1 // pred_check
      _
    $region11: #{agcrn_cell_pallas.1} parent=1 // pred_check_branch
      %22 = sbr.rel (0) target = $region13
    $region12: #{agcrn_cell_pallas.1} parent=1 // pred_region
      _
    $region13: #{agcrn_cell_pallas.1} parent=1 // pred_fallthru
      _
    // Predicated region
    $region14: #{agcrn_cell_pallas.1} parent=1 // pred_check
      _
    $region15: #{agcrn_cell_pallas.1} parent=1 // pred_check_branch
      %24 = sbr.rel (0) target = $region17
    $region16: #{agcrn_cell_pallas.1} parent=1 // pred_region
      _
    $region17: #{agcrn_cell_pallas.1} parent=1 // pred_fallthru
      _
    // Predicated region
    $region18: #{agcrn_cell_pallas.1} parent=1 // pred_check
      _
    $region19: #{agcrn_cell_pallas.1} parent=1 // pred_check_branch
      %26 = sbr.rel (0) target = $region21
    $region20: #{agcrn_cell_pallas.1} parent=1 // pred_region
      _
    $region21: #{agcrn_cell_pallas.1} parent=1 // pred_fallthru
      _
    // Predicated region
    $region22: #{agcrn_cell_pallas.1} parent=1 // pred_check
      _
    $region23: #{agcrn_cell_pallas.1} parent=1 // pred_check_branch
      %28 = sbr.rel (0) target = $region25
    $region24: #{agcrn_cell_pallas.1} parent=1 // pred_region
      _
    $region25: #{agcrn_cell_pallas.1} parent=1 // pred_fallthru
      _
    // Predicated region
    $region26: #{agcrn_cell_pallas.1} parent=1 // pred_check
      _
    $region27: #{agcrn_cell_pallas.1} parent=1 // pred_check_branch
      %30 = sbr.rel (0) target = $region29
    $region28: #{agcrn_cell_pallas.1} parent=1 // pred_region
      _
    $region29: #{agcrn_cell_pallas.1} parent=1 // pred_fallthru
      _
    // Predicated region
    $region30: #{agcrn_cell_pallas.1} parent=1 // pred_check
      _
    $region31: #{agcrn_cell_pallas.1} parent=1 // pred_check_branch
      %32 = sbr.rel (0) target = $region33
    $region32: #{agcrn_cell_pallas.1} parent=1 // pred_region
      _
    $region33: #{agcrn_cell_pallas.1} parent=1 // pred_fallthru
      _
    // Predicated region
    $region34: #{agcrn_cell_pallas.1} parent=1 // pred_check
      _
    $region35: #{agcrn_cell_pallas.1} parent=1 // pred_check_branch
      %34 = sbr.rel (0) target = $region37
    $region36: #{agcrn_cell_pallas.1} parent=1 // pred_region
      _
    $region37: #{agcrn_cell_pallas.1} parent=1 // pred_fallthru
      _
    // Predicated region
    $region38: #{agcrn_cell_pallas.1} parent=1 // pred_check
      _
    $region39: #{agcrn_cell_pallas.1} parent=1 // pred_check_branch
      %36 = sbr.rel (0) target = $region41
    $region40: #{agcrn_cell_pallas.1} parent=1 // pred_region
      _
    $region41: #{agcrn_cell_pallas.1} parent=1 // pred_fallthru
      _
    // Predicated region
    $region42: #{agcrn_cell_pallas.1} parent=1 // pred_check
      _
    $region43: #{agcrn_cell_pallas.1} parent=1 // pred_check_branch
      %38 = sbr.rel (0) target = $region45
    $region44: #{agcrn_cell_pallas.1} parent=1 // pred_region
      _
    $region45: #{agcrn_cell_pallas.1} parent=1 // pred_fallthru
      _
    %v40 = vld [vmem:[%s0] sm:$0xff]
    %v41 = vld [vmem:[%s0 + $0x8] sm:$0xff]
    %v42 = vpack.c.bf16 %v41, %v40
    %v43 = vld [vmem:[%s2] sm:$0xf]
    %v44 = vld [vmem:[%s2 + $0x4] sm:$0xf]
    %v47 = vunpack.c.l.b16 %v43
    %v48 = vunpack.c.l.b16 %v44
    %v49 = vpack.c.b16 %v48, %v47
    %vm50 = vcmask 130048
    %v52 = vsel %vm50, %v49, 0
    %54 = vmatprep.subr.bf16.mxu0 0
    %55 = vmatpush1.bf16.msra.mxu0 %v42
    %56 = vmatprep.subr.bf16.mxu0 0
    %57 = vmatpush1.bf16.msra.mxu0 0
    %58 = vmatprep.subr.bf16.mxu0 0
    %59 = vmatpush1.bf16.msra.mxu0 0
    %60 = vmatprep.subr.bf16.mxu0 0
    %61 = vmatpush1.bf16.msra.mxu0 0
    %62 = vmatprep.subr.bf16.mxu0 0
    %63 = vmatpush1.bf16.msra.mxu0 0
    %64 = vmatprep.subr.bf16.mxu0 0
    %65 = vmatpush1.bf16.msra.mxu0 0
    %66 = vmatprep.subr.bf16.mxu0 0
    %67 = vmatpush1.bf16.msra.mxu0 0
    %68 = vmatprep.subr.bf16.mxu0 0
    %69 = vmatpush1.bf16.msra.mxu0 0
    %70 = vmatprep.subr.bf16.mxu0 0
    %71 = vmatpush1.bf16.msra.mxu0 0
    %72 = vmatprep.subr.bf16.mxu0 0
    %73 = vmatpush1.bf16.msra.mxu0 0
    %74 = vmatprep.subr.bf16.mxu0 0
    %75 = vmatpush1.bf16.msra.mxu0 0
    %76 = vmatprep.subr.bf16.mxu0 0
    %77 = vmatpush1.bf16.msra.mxu0 0
    %78 = vmatprep.subr.bf16.mxu0 0
    %79 = vmatpush1.bf16.msra.mxu0 0
    %80 = vmatprep.subr.bf16.mxu0 0
    %81 = vmatpush1.bf16.msra.mxu0 0
    %82 = vmatprep.subr.bf16.mxu0 0
    %83 = vmatpush1.bf16.msra.mxu0 0
    %84 = vmatprep.subr.bf16.mxu0 0
    %85 = vmatpush1.bf16.msra.mxu0 0
    %86 = vmatprep.mubr.bf16.mxu0 0
    %87 = vmatmul.mubr.bf16.gmra.mrb[0].mxu0 %v52
    %v88 = vpop.f32.mrb[0].mxu0
    %v89 = vadd.f32 0.0, %v88
    %v90 = vpop.f32.mrb[0].mxu0
    %v91 = vpop.f32.mrb[0].mxu0
    %v92 = vadd.f32 0.0, %v91
    %v93 = vpop.f32.mrb[0].mxu0
    %94 = vdwg.mxu0
    %s95 = scalar_lea.vmem %s2, 8
    %v96 = vld [vmem:[%s95] sm:$0xf]
    %v97 = vld [vmem:[%s95 + $0x4] sm:$0xf]
    %v100 = vunpack.c.l.b16 %v96
    %v101 = vunpack.c.l.b16 %v97
    %v102 = vpack.c.b16 %v101, %v100
    %v104 = vsel %vm50, %v102, 0
    %106 = vmatprep.subr.bf16.mxu0 0
    %107 = vmatpush1.bf16.msra.mxu0 %v42
    %108 = vmatprep.subr.bf16.mxu0 0
    %109 = vmatpush1.bf16.msra.mxu0 0
    %110 = vmatprep.subr.bf16.mxu0 0
    %111 = vmatpush1.bf16.msra.mxu0 0
    %112 = vmatprep.subr.bf16.mxu0 0
    %113 = vmatpush1.bf16.msra.mxu0 0
    %114 = vmatprep.subr.bf16.mxu0 0
    %115 = vmatpush1.bf16.msra.mxu0 0
    %116 = vmatprep.subr.bf16.mxu0 0
    %117 = vmatpush1.bf16.msra.mxu0 0
    %118 = vmatprep.subr.bf16.mxu0 0
    %119 = vmatpush1.bf16.msra.mxu0 0
    %120 = vmatprep.subr.bf16.mxu0 0
    %121 = vmatpush1.bf16.msra.mxu0 0
    %122 = vmatprep.subr.bf16.mxu0 0
    %123 = vmatpush1.bf16.msra.mxu0 0
    %124 = vmatprep.subr.bf16.mxu0 0
    %125 = vmatpush1.bf16.msra.mxu0 0
    %126 = vmatprep.subr.bf16.mxu0 0
    %127 = vmatpush1.bf16.msra.mxu0 0
    %128 = vmatprep.subr.bf16.mxu0 0
    %129 = vmatpush1.bf16.msra.mxu0 0
    %130 = vmatprep.subr.bf16.mxu0 0
    %131 = vmatpush1.bf16.msra.mxu0 0
    %132 = vmatprep.subr.bf16.mxu0 0
    %133 = vmatpush1.bf16.msra.mxu0 0
    %134 = vmatprep.subr.bf16.mxu0 0
    %135 = vmatpush1.bf16.msra.mxu0 0
    %136 = vmatprep.subr.bf16.mxu0 0
    %137 = vmatpush1.bf16.msra.mxu0 0
    %138 = vmatprep.mubr.bf16.mxu0 0
    %139 = vmatmul.mubr.bf16.gmra.mrb[0].mxu0 %v104
    %v140 = vpop.f32.mrb[0].mxu0
    %v141 = vadd.f32 0.0, %v140
    %v142 = vpop.f32.mrb[0].mxu0
    %v143 = vpop.f32.mrb[0].mxu0
    %v144 = vadd.f32 0.0, %v143
    %v145 = vpop.f32.mrb[0].mxu0
    %146 = vdwg.mxu0
    %149 = vrot.lane.b32.xlu0 %v89, 4
    %v150 = vpop.permute.xlu0 %149
    %151 = vrot.lane.b32.xlu0 %v92, 4
    %v152 = vpop.permute.xlu0 %151
    %157 = vrot.lane.b32.xlu0 %v141, 8
    %v158 = vpop.permute.xlu0 %157
    %159 = vrot.lane.b32.xlu0 %v144, 8
    %v160 = vpop.permute.xlu0 %159
    %vm163 = vcmask 31744
    %v164 = vsel %vm163, %v40, %v150
    %v165 = vsel %vm163, %v41, %v152
    %vm166 = vcmask 64512
    %v167 = vsel %vm166, %v164, %v158
    %v168 = vsel %vm166, %v165, %v160
    %s169 = scalar_lea.vmem %s0, 16
    %v170 = vld [vmem:[%s169] sm:$0xff]
    %v171 = vld [vmem:[%s169 + $0x8] sm:$0xff]
    %v172 = vpack.c.bf16 %v171, %v170
    %173 = vmatprep.subr.bf16.mxu0 0
    %174 = vmatpush1.bf16.msra.mxu0 %v172
    %175 = vmatprep.subr.bf16.mxu0 0
    %176 = vmatpush1.bf16.msra.mxu0 0
    %177 = vmatprep.subr.bf16.mxu0 0
    %178 = vmatpush1.bf16.msra.mxu0 0
    %179 = vmatprep.subr.bf16.mxu0 0
    %180 = vmatpush1.bf16.msra.mxu0 0
    %181 = vmatprep.subr.bf16.mxu0 0
    %182 = vmatpush1.bf16.msra.mxu0 0
    %183 = vmatprep.subr.bf16.mxu0 0
    %184 = vmatpush1.bf16.msra.mxu0 0
    %185 = vmatprep.subr.bf16.mxu0 0
    %186 = vmatpush1.bf16.msra.mxu0 0
    %187 = vmatprep.subr.bf16.mxu0 0
    %188 = vmatpush1.bf16.msra.mxu0 0
    %189 = vmatprep.subr.bf16.mxu0 0
    %190 = vmatpush1.bf16.msra.mxu0 0
    %191 = vmatprep.subr.bf16.mxu0 0
    %192 = vmatpush1.bf16.msra.mxu0 0
    %193 = vmatprep.subr.bf16.mxu0 0
    %194 = vmatpush1.bf16.msra.mxu0 0
    %195 = vmatprep.subr.bf16.mxu0 0
    %196 = vmatpush1.bf16.msra.mxu0 0
    %197 = vmatprep.subr.bf16.mxu0 0
    %198 = vmatpush1.bf16.msra.mxu0 0
    %199 = vmatprep.subr.bf16.mxu0 0
    %200 = vmatpush1.bf16.msra.mxu0 0
    %201 = vmatprep.subr.bf16.mxu0 0
    %202 = vmatpush1.bf16.msra.mxu0 0
    %203 = vmatprep.subr.bf16.mxu0 0
    %204 = vmatpush1.bf16.msra.mxu0 0
    %205 = vmatprep.mubr.bf16.mxu0 0
    %206 = vmatmul.mubr.bf16.gmra.mrb[0].mxu0 %v52
    %v207 = vpop.f32.mrb[0].mxu0
    %v208 = vadd.f32 0.0, %v207
    %v209 = vpop.f32.mrb[0].mxu0
    %v210 = vpop.f32.mrb[0].mxu0
    %v211 = vadd.f32 0.0, %v210
    %v212 = vpop.f32.mrb[0].mxu0
    %213 = vdwg.mxu0
    %214 = vmatprep.subr.bf16.mxu0 0
    %215 = vmatpush1.bf16.msra.mxu0 %v172
    %216 = vmatprep.subr.bf16.mxu0 0
    %217 = vmatpush1.bf16.msra.mxu0 0
    %218 = vmatprep.subr.bf16.mxu0 0
    %219 = vmatpush1.bf16.msra.mxu0 0
    %220 = vmatprep.subr.bf16.mxu0 0
    %221 = vmatpush1.bf16.msra.mxu0 0
    %222 = vmatprep.subr.bf16.mxu0 0
    %223 = vmatpush1.bf16.msra.mxu0 0
    %224 = vmatprep.subr.bf16.mxu0 0
    %225 = vmatpush1.bf16.msra.mxu0 0
    %226 = vmatprep.subr.bf16.mxu0 0
    %227 = vmatpush1.bf16.msra.mxu0 0
    %228 = vmatprep.subr.bf16.mxu0 0
    %229 = vmatpush1.bf16.msra.mxu0 0
    %230 = vmatprep.subr.bf16.mxu0 0
    %231 = vmatpush1.bf16.msra.mxu0 0
    %232 = vmatprep.subr.bf16.mxu0 0
    %233 = vmatpush1.bf16.msra.mxu0 0
    %234 = vmatprep.subr.bf16.mxu0 0
    %235 = vmatpush1.bf16.msra.mxu0 0
    %236 = vmatprep.subr.bf16.mxu0 0
    %237 = vmatpush1.bf16.msra.mxu0 0
    %238 = vmatprep.subr.bf16.mxu0 0
    %239 = vmatpush1.bf16.msra.mxu0 0
    %240 = vmatprep.subr.bf16.mxu0 0
    %241 = vmatpush1.bf16.msra.mxu0 0
    %242 = vmatprep.subr.bf16.mxu0 0
    %243 = vmatpush1.bf16.msra.mxu0 0
    %244 = vmatprep.subr.bf16.mxu0 0
    %245 = vmatpush1.bf16.msra.mxu0 0
    %246 = vmatprep.mubr.bf16.mxu0 0
    %247 = vmatmul.mubr.bf16.gmra.mrb[0].mxu0 %v104
    %v248 = vpop.f32.mrb[0].mxu0
    %v249 = vadd.f32 0.0, %v248
    %v250 = vpop.f32.mrb[0].mxu0
    %v251 = vpop.f32.mrb[0].mxu0
    %v252 = vadd.f32 0.0, %v251
    %v253 = vpop.f32.mrb[0].mxu0
    %254 = vdwg.mxu0
    %257 = vrot.lane.b32.xlu0 %v208, 4
    %v258 = vpop.permute.xlu0 %257
    %259 = vrot.lane.b32.xlu0 %v211, 4
    %v260 = vpop.permute.xlu0 %259
    %265 = vrot.lane.b32.xlu0 %v249, 8
    %v266 = vpop.permute.xlu0 %265
    %267 = vrot.lane.b32.xlu0 %v252, 8
    %v268 = vpop.permute.xlu0 %267
    %v271 = vsel %vm163, %v170, %v258
    %v272 = vsel %vm163, %v171, %v260
    %v273 = vsel %vm166, %v271, %v266
    %v274 = vsel %vm166, %v272, %v268
    %v275 = vld [vmem:[%s1] sm:$0xff]
    %v276 = vld [vmem:[%s1 + $0x8] sm:$0xff]
    %v277 = vpack.c.bf16 %v276, %v275
    %278 = vmatprep.subr.bf16.mxu0 0
    %279 = vmatpush1.bf16.msra.mxu0 %v277
    %280 = vmatprep.subr.bf16.mxu0 0
    %281 = vmatpush1.bf16.msra.mxu0 0
    %282 = vmatprep.subr.bf16.mxu0 0
    %283 = vmatpush1.bf16.msra.mxu0 0
    %284 = vmatprep.subr.bf16.mxu0 0
    %285 = vmatpush1.bf16.msra.mxu0 0
    %286 = vmatprep.subr.bf16.mxu0 0
    %287 = vmatpush1.bf16.msra.mxu0 0
    %288 = vmatprep.subr.bf16.mxu0 0
    %289 = vmatpush1.bf16.msra.mxu0 0
    %290 = vmatprep.subr.bf16.mxu0 0
    %291 = vmatpush1.bf16.msra.mxu0 0
    %292 = vmatprep.subr.bf16.mxu0 0
    %293 = vmatpush1.bf16.msra.mxu0 0
    %294 = vmatprep.subr.bf16.mxu0 0
    %295 = vmatpush1.bf16.msra.mxu0 0
    %296 = vmatprep.subr.bf16.mxu0 0
    %297 = vmatpush1.bf16.msra.mxu0 0
    %298 = vmatprep.subr.bf16.mxu0 0
    %299 = vmatpush1.bf16.msra.mxu0 0
    %300 = vmatprep.subr.bf16.mxu0 0
    %301 = vmatpush1.bf16.msra.mxu0 0
    %302 = vmatprep.subr.bf16.mxu0 0
    %303 = vmatpush1.bf16.msra.mxu0 0
    %304 = vmatprep.subr.bf16.mxu0 0
    %305 = vmatpush1.bf16.msra.mxu0 0
    %306 = vmatprep.subr.bf16.mxu0 0
    %307 = vmatpush1.bf16.msra.mxu0 0
    %308 = vmatprep.subr.bf16.mxu0 0
    %309 = vmatpush1.bf16.msra.mxu0 0
    %310 = vmatprep.mubr.bf16.mxu0 0
    %311 = vmatmul.mubr.bf16.gmra.mrb[0].mxu0 %v52
    %v312 = vpop.f32.mrb[0].mxu0
    %v313 = vadd.f32 0.0, %v312
    %v314 = vpop.f32.mrb[0].mxu0
    %v315 = vpop.f32.mrb[0].mxu0
    %v316 = vadd.f32 0.0, %v315
    %v317 = vpop.f32.mrb[0].mxu0
    %318 = vdwg.mxu0
    %319 = vmatprep.subr.bf16.mxu0 0
    %320 = vmatpush1.bf16.msra.mxu0 %v277
    %321 = vmatprep.subr.bf16.mxu0 0
    %322 = vmatpush1.bf16.msra.mxu0 0
    %323 = vmatprep.subr.bf16.mxu0 0
    %324 = vmatpush1.bf16.msra.mxu0 0
    %325 = vmatprep.subr.bf16.mxu0 0
    %326 = vmatpush1.bf16.msra.mxu0 0
    %327 = vmatprep.subr.bf16.mxu0 0
    %328 = vmatpush1.bf16.msra.mxu0 0
    %329 = vmatprep.subr.bf16.mxu0 0
    %330 = vmatpush1.bf16.msra.mxu0 0
    %331 = vmatprep.subr.bf16.mxu0 0
    %332 = vmatpush1.bf16.msra.mxu0 0
    %333 = vmatprep.subr.bf16.mxu0 0
    %334 = vmatpush1.bf16.msra.mxu0 0
    %335 = vmatprep.subr.bf16.mxu0 0
    %336 = vmatpush1.bf16.msra.mxu0 0
    %337 = vmatprep.subr.bf16.mxu0 0
    %338 = vmatpush1.bf16.msra.mxu0 0
    %339 = vmatprep.subr.bf16.mxu0 0
    %340 = vmatpush1.bf16.msra.mxu0 0
    %341 = vmatprep.subr.bf16.mxu0 0
    %342 = vmatpush1.bf16.msra.mxu0 0
    %343 = vmatprep.subr.bf16.mxu0 0
    %344 = vmatpush1.bf16.msra.mxu0 0
    %345 = vmatprep.subr.bf16.mxu0 0
    %346 = vmatpush1.bf16.msra.mxu0 0
    %347 = vmatprep.subr.bf16.mxu0 0
    %348 = vmatpush1.bf16.msra.mxu0 0
    %349 = vmatprep.subr.bf16.mxu0 0
    %350 = vmatpush1.bf16.msra.mxu0 0
    %351 = vmatprep.mubr.bf16.mxu0 0
    %352 = vmatmul.mubr.bf16.gmra.mrb[0].mxu0 %v104
    %v353 = vpop.f32.mrb[0].mxu0
    %v354 = vadd.f32 0.0, %v353
    %v355 = vpop.f32.mrb[0].mxu0
    %v356 = vpop.f32.mrb[0].mxu0
    %v357 = vadd.f32 0.0, %v356
    %v358 = vpop.f32.mrb[0].mxu0
    %359 = vdwg.mxu0
    %362 = vrot.lane.b32.xlu0 %v313, 32
    %v363 = vpop.permute.xlu0 %362
    %364 = vrot.lane.b32.xlu0 %v316, 32
    %v365 = vpop.permute.xlu0 %364
    %370 = vrot.lane.b32.xlu0 %v354, 64
    %v371 = vpop.permute.xlu0 %370
    %372 = vrot.lane.b32.xlu0 %v357, 64
    %v373 = vpop.permute.xlu0 %372
    %vm376 = vcmask 261120
    %v377 = vsel %vm376, %v275, %v363
    %v378 = vsel %vm376, %v276, %v365
    %vm379 = vcmask 523264
    %v380 = vsel %vm379, %v377, %v371
    %v381 = vsel %vm379, %v378, %v373
    %s382 = scalar_lea.vmem %s1, 16
    %v383 = vld [vmem:[%s382] sm:$0xff]
    %v384 = vld [vmem:[%s382 + $0x8] sm:$0xff]
    %v385 = vpack.c.bf16 %v384, %v383
    %386 = vmatprep.subr.bf16.mxu0 0
    %387 = vmatpush1.bf16.msra.mxu0 %v385
    %388 = vmatprep.subr.bf16.mxu0 0
    %389 = vmatpush1.bf16.msra.mxu0 0
    %390 = vmatprep.subr.bf16.mxu0 0
    %391 = vmatpush1.bf16.msra.mxu0 0
    %392 = vmatprep.subr.bf16.mxu0 0
    %393 = vmatpush1.bf16.msra.mxu0 0
    %394 = vmatprep.subr.bf16.mxu0 0
    %395 = vmatpush1.bf16.msra.mxu0 0
    %396 = vmatprep.subr.bf16.mxu0 0
    %397 = vmatpush1.bf16.msra.mxu0 0
    %398 = vmatprep.subr.bf16.mxu0 0
    %399 = vmatpush1.bf16.msra.mxu0 0
    %400 = vmatprep.subr.bf16.mxu0 0
    %401 = vmatpush1.bf16.msra.mxu0 0
    %402 = vmatprep.subr.bf16.mxu0 0
    %403 = vmatpush1.bf16.msra.mxu0 0
    %404 = vmatprep.subr.bf16.mxu0 0
    %405 = vmatpush1.bf16.msra.mxu0 0
    %406 = vmatprep.subr.bf16.mxu0 0
    %407 = vmatpush1.bf16.msra.mxu0 0
    %408 = vmatprep.subr.bf16.mxu0 0
    %409 = vmatpush1.bf16.msra.mxu0 0
    %410 = vmatprep.subr.bf16.mxu0 0
    %411 = vmatpush1.bf16.msra.mxu0 0
    %412 = vmatprep.subr.bf16.mxu0 0
    %413 = vmatpush1.bf16.msra.mxu0 0
    %414 = vmatprep.subr.bf16.mxu0 0
    %415 = vmatpush1.bf16.msra.mxu0 0
    %416 = vmatprep.subr.bf16.mxu0 0
    %417 = vmatpush1.bf16.msra.mxu0 0
    %418 = vmatprep.mubr.bf16.mxu0 0
    %419 = vmatmul.mubr.bf16.gmra.mrb[0].mxu0 %v52
    %v420 = vpop.f32.mrb[0].mxu0
    %v421 = vadd.f32 0.0, %v420
    %v422 = vpop.f32.mrb[0].mxu0
    %v423 = vpop.f32.mrb[0].mxu0
    %v424 = vadd.f32 0.0, %v423
    %v425 = vpop.f32.mrb[0].mxu0
    %426 = vdwg.mxu0
    %427 = vmatprep.subr.bf16.mxu0 0
    %428 = vmatpush1.bf16.msra.mxu0 %v385
    %429 = vmatprep.subr.bf16.mxu0 0
    %430 = vmatpush1.bf16.msra.mxu0 0
    %431 = vmatprep.subr.bf16.mxu0 0
    %432 = vmatpush1.bf16.msra.mxu0 0
    %433 = vmatprep.subr.bf16.mxu0 0
    %434 = vmatpush1.bf16.msra.mxu0 0
    %435 = vmatprep.subr.bf16.mxu0 0
    %436 = vmatpush1.bf16.msra.mxu0 0
    %437 = vmatprep.subr.bf16.mxu0 0
    %438 = vmatpush1.bf16.msra.mxu0 0
    %439 = vmatprep.subr.bf16.mxu0 0
    %440 = vmatpush1.bf16.msra.mxu0 0
    %441 = vmatprep.subr.bf16.mxu0 0
    %442 = vmatpush1.bf16.msra.mxu0 0
    %443 = vmatprep.subr.bf16.mxu0 0
    %444 = vmatpush1.bf16.msra.mxu0 0
    %445 = vmatprep.subr.bf16.mxu0 0
    %446 = vmatpush1.bf16.msra.mxu0 0
    %447 = vmatprep.subr.bf16.mxu0 0
    %448 = vmatpush1.bf16.msra.mxu0 0
    %449 = vmatprep.subr.bf16.mxu0 0
    %450 = vmatpush1.bf16.msra.mxu0 0
    %451 = vmatprep.subr.bf16.mxu0 0
    %452 = vmatpush1.bf16.msra.mxu0 0
    %453 = vmatprep.subr.bf16.mxu0 0
    %454 = vmatpush1.bf16.msra.mxu0 0
    %455 = vmatprep.subr.bf16.mxu0 0
    %456 = vmatpush1.bf16.msra.mxu0 0
    %457 = vmatprep.subr.bf16.mxu0 0
    %458 = vmatpush1.bf16.msra.mxu0 0
    %459 = vmatprep.mubr.bf16.mxu0 0
    %460 = vmatmul.mubr.bf16.gmra.mrb[0].mxu0 %v104
    %v461 = vpop.f32.mrb[0].mxu0
    %v462 = vadd.f32 0.0, %v461
    %v463 = vpop.f32.mrb[0].mxu0
    %v464 = vpop.f32.mrb[0].mxu0
    %v465 = vadd.f32 0.0, %v464
    %v466 = vpop.f32.mrb[0].mxu0
    %467 = vdwg.mxu0
    %470 = vrot.lane.b32.xlu0 %v421, 32
    %v471 = vpop.permute.xlu0 %470
    %472 = vrot.lane.b32.xlu0 %v424, 32
    %v473 = vpop.permute.xlu0 %472
    %478 = vrot.lane.b32.xlu0 %v462, 64
    %v479 = vpop.permute.xlu0 %478
    %480 = vrot.lane.b32.xlu0 %v465, 64
    %v481 = vpop.permute.xlu0 %480
    %v484 = vsel %vm376, %v383, %v471
    %v485 = vsel %vm376, %v384, %v473
    %v486 = vsel %vm379, %v484, %v479
    %v487 = vsel %vm379, %v485, %v481
    %v488 = vld [vmem:[%s3] sm:$0xff]
    %v489 = vld [vmem:[%s3 + $0x8] sm:$0xff]
    %v490 = vld [vmem:[%s3 + $0x10] sm:$0xff]
    %v491 = vld [vmem:[%s3 + $0x18] sm:$0xff]
    %v492 = vld [vmem:[%s8] sm:$0xff]
    %v493 = vld [vmem:[%s8 + $0x8] sm:$0xff]
    %v494 = vld [vmem:[%s9] sm:$0xff]
    %v495 = vld [vmem:[%s9 + $0x8] sm:$0xff]
    %v496 = vld [vmem:[%s10] sm:$0xff]
    %v497 = vld [vmem:[%s10 + $0x8] sm:$0xff]
    %v498 = vld [vmem:[%s4] sm:$0xf]
    %v499 = vld [vmem:[%s4 + $0x4] sm:$0xf]
    %v500 = vld [vmem:[%s4 + $0x8] sm:$0xf]
    %v501 = vld [vmem:[%s4 + $0xc] sm:$0xf]
    %v502 = vld [vmem:[%s4 + $0x10] sm:$0xf]
    %v503 = vld [vmem:[%s4 + $0x14] sm:$0xf]
    %v504 = vld [vmem:[%s4 + $0x18] sm:$0xf]
    %v505 = vld [vmem:[%s4 + $0x1c] sm:$0xf]
    %v506 = vld [vmem:[%s4 + $0x20] sm:$0xf]
    %v507 = vld [vmem:[%s4 + $0x24] sm:$0xf]
    %v508 = vld [vmem:[%s4 + $0x28] sm:$0xf]
    %v509 = vld [vmem:[%s4 + $0x2c] sm:$0xf]
    %v510 = vld [vmem:[%s4 + $0x30] sm:$0xf]
    %v511 = vld [vmem:[%s4 + $0x34] sm:$0xf]
    %v512 = vld [vmem:[%s4 + $0x38] sm:$0xf]
    %v513 = vld [vmem:[%s4 + $0x3c] sm:$0xf]
    %v514 = vld [vmem:[%s4 + $0x40] sm:$0xf]
    %v515 = vld [vmem:[%s4 + $0x44] sm:$0xf]
    %v516 = vld [vmem:[%s4 + $0x48] sm:$0xf]
    %v517 = vld [vmem:[%s4 + $0x4c] sm:$0xf]
    %v518 = vld [vmem:[%s4 + $0x50] sm:$0xf]
    %v519 = vld [vmem:[%s4 + $0x54] sm:$0xf]
    %v520 = vld [vmem:[%s4 + $0x58] sm:$0xf]
    %v521 = vld [vmem:[%s4 + $0x5c] sm:$0xf]
    %v522 = vld [vmem:[%s4 + $0x60] sm:$0xf]
    %v523 = vld [vmem:[%s4 + $0x64] sm:$0xf]
    %v524 = vld [vmem:[%s4 + $0x68] sm:$0xf]
    %v525 = vld [vmem:[%s4 + $0x6c] sm:$0xf]
    %v526 = vld [vmem:[%s4 + $0x70] sm:$0xf]
    %v527 = vld [vmem:[%s4 + $0x74] sm:$0xf]
    %v528 = vld [vmem:[%s4 + $0x78] sm:$0xf]
    %v529 = vld [vmem:[%s4 + $0x7c] sm:$0xf]
    %v530 = vld [vmem:[%s1] sm:$0xff]
    %v531 = vld [vmem:[%s1 + $0x8] sm:$0xff]
    %v532 = vld [vmem:[%s1 + $0x10] sm:$0xff]
    %v533 = vld [vmem:[%s1 + $0x18] sm:$0xff]
    %v534 = vpack.c.bf16 %v168, %v167
    %v535 = vpack.c.bf16 %v274, %v273
    %v536 = vld [vmem:[%s5] sm:$0xff]
    %v537 = vld [vmem:[%s5 + $0x8] sm:$0xff]
    %v538 = vld [vmem:[%s5 + $0x10] sm:$0xff]
    %v539 = vld [vmem:[%s5 + $0x18] sm:$0x33]
    %v540 = vld [vmem:[%s5 + $0x20] sm:$0x33]
    %v541 = vld [vmem:[%s5 + $0x28] sm:$0x33]
    %v548 = vunpack.c.l.b16 %v536
    %v549 = vunpack.c.h.b16 %v536
    %v550 = vunpack.c.l.b16 %v537
    %v551 = vunpack.c.h.b16 %v537
    %v552 = vunpack.c.l.b16 %v538
    %v553 = vunpack.c.h.b16 %v538
    %v554 = vunpack.c.l.b16 %v539
    %v555 = vunpack.c.h.b16 %v539
    %v556 = vunpack.c.l.b16 %v540
    %v557 = vunpack.c.h.b16 %v540
    %v558 = vunpack.c.l.b16 %v541
    %v559 = vunpack.c.h.b16 %v541
    %v560 = vpack.c.b16 %v554, %v548
    %v561 = vpack.c.b16 %v555, %v549
    %v562 = vpack.c.b16 %v556, %v550
    %v563 = vpack.c.b16 %v557, %v551
    %v564 = vpack.c.b16 %v558, %v552
    %v565 = vpack.c.b16 %v559, %v553
    %vm566 = vcmask 97280
    %v568 = vsel %vm566, %v534, 0
    %v571 = vsel %vm566, %v535, 0
    %vm573 = vcmask 1045504
    %v575 = vsel %vm573, %v560, 0
    %v578 = vsel %vm573, %v561, 0
    %v581 = vsel %vm573, %v562, 0
    %v584 = vsel %vm573, %v563, 0
    %v587 = vsel %vm573, %v564, 0
    %v590 = vsel %vm573, %v565, 0
    %592 = vmatprep.subr.bf16.mxu0 %v578
    %593 = vmatpush1.bf16.msra.mxu0 %v575
    %594 = vmatprep.subr.bf16.mxu0 0
    %595 = vmatpush1.bf16.msra.mxu0 0
    %596 = vmatprep.subr.bf16.mxu0 0
    %597 = vmatpush1.bf16.msra.mxu0 0
    %598 = vmatprep.subr.bf16.mxu0 0
    %599 = vmatpush1.bf16.msra.mxu0 0
    %600 = vmatprep.subr.bf16.mxu0 0
    %601 = vmatpush1.bf16.msra.mxu0 0
    %602 = vmatprep.subr.bf16.mxu0 0
    %603 = vmatpush1.bf16.msra.mxu0 0
    %604 = vmatprep.subr.bf16.mxu0 0
    %605 = vmatpush1.bf16.msra.mxu0 0
    %606 = vmatprep.subr.bf16.mxu0 0
    %607 = vmatpush1.bf16.msra.mxu0 0
    %608 = vmatprep.subr.bf16.mxu0 0
    %609 = vmatpush1.bf16.msra.mxu0 0
    %610 = vmatprep.subr.bf16.mxu0 0
    %611 = vmatpush1.bf16.msra.mxu0 0
    %612 = vmatprep.subr.bf16.mxu0 0
    %613 = vmatpush1.bf16.msra.mxu0 0
    %614 = vmatprep.subr.bf16.mxu0 0
    %615 = vmatpush1.bf16.msra.mxu0 0
    %616 = vmatprep.subr.bf16.mxu0 0
    %617 = vmatpush1.bf16.msra.mxu0 0
    %618 = vmatprep.subr.bf16.mxu0 0
    %619 = vmatpush1.bf16.msra.mxu0 0
    %620 = vmatprep.subr.bf16.mxu0 0
    %621 = vmatpush1.bf16.msra.mxu0 0
    %622 = vmatprep.subr.bf16.mxu0 0
    %623 = vmatpush1.bf16.msra.mxu0 0
    %624 = vmatprep.mubr.bf16.mxu0 0
    %625 = vmatmul.mubr.bf16.gmra.mrb[0].mxu0 %v568
    %v626 = vpop.f32.mrb[0].mxu0
    %v627 = vadd.f32 0.0, %v626
    %v628 = vpop.f32.mrb[0].mxu0
    %v629 = vadd.f32 0.0, %v628
    %v630 = vpop.f32.mrb[0].mxu0
    %v631 = vadd.f32 0.0, %v630
    %v632 = vpop.f32.mrb[0].mxu0
    %v633 = vadd.f32 0.0, %v632
    %634 = vmatprep.mubr.bf16.mxu0 0
    %635 = vmatmul.mubr.bf16.gmra.mrb[0].mxu0 %v571
    %v636 = vpop.f32.mrb[0].mxu0
    %v637 = vadd.f32 0.0, %v636
    %v638 = vpop.f32.mrb[0].mxu0
    %v639 = vadd.f32 0.0, %v638
    %v640 = vpop.f32.mrb[0].mxu0
    %v641 = vadd.f32 0.0, %v640
    %v642 = vpop.f32.mrb[0].mxu0
    %v643 = vadd.f32 0.0, %v642
    %644 = vdwg.mxu0
    %645 = vmatprep.subr.bf16.mxu0 %v584
    %646 = vmatpush1.bf16.msra.mxu0 %v581
    %647 = vmatprep.subr.bf16.mxu0 0
    %648 = vmatpush1.bf16.msra.mxu0 0
    %649 = vmatprep.subr.bf16.mxu0 0
    %650 = vmatpush1.bf16.msra.mxu0 0
    %651 = vmatprep.subr.bf16.mxu0 0
    %652 = vmatpush1.bf16.msra.mxu0 0
    %653 = vmatprep.subr.bf16.mxu0 0
    %654 = vmatpush1.bf16.msra.mxu0 0
    %655 = vmatprep.subr.bf16.mxu0 0
    %656 = vmatpush1.bf16.msra.mxu0 0
    %657 = vmatprep.subr.bf16.mxu0 0
    %658 = vmatpush1.bf16.msra.mxu0 0
    %659 = vmatprep.subr.bf16.mxu0 0
    %660 = vmatpush1.bf16.msra.mxu0 0
    %661 = vmatprep.subr.bf16.mxu0 0
    %662 = vmatpush1.bf16.msra.mxu0 0
    %663 = vmatprep.subr.bf16.mxu0 0
    %664 = vmatpush1.bf16.msra.mxu0 0
    %665 = vmatprep.subr.bf16.mxu0 0
    %666 = vmatpush1.bf16.msra.mxu0 0
    %667 = vmatprep.subr.bf16.mxu0 0
    %668 = vmatpush1.bf16.msra.mxu0 0
    %669 = vmatprep.subr.bf16.mxu0 0
    %670 = vmatpush1.bf16.msra.mxu0 0
    %671 = vmatprep.subr.bf16.mxu0 0
    %672 = vmatpush1.bf16.msra.mxu0 0
    %673 = vmatprep.subr.bf16.mxu0 0
    %674 = vmatpush1.bf16.msra.mxu0 0
    %675 = vmatprep.subr.bf16.mxu0 0
    %676 = vmatpush1.bf16.msra.mxu0 0
    %677 = vmatprep.mubr.bf16.mxu0 0
    %678 = vmatmul.mubr.bf16.gmra.mrb[0].mxu0 %v568
    %v679 = vpop.f32.mrb[0].mxu0
    %v680 = vadd.f32 0.0, %v679
    %v681 = vpop.f32.mrb[0].mxu0
    %v682 = vadd.f32 0.0, %v681
    %v683 = vpop.f32.mrb[0].mxu0
    %v684 = vadd.f32 0.0, %v683
    %v685 = vpop.f32.mrb[0].mxu0
    %v686 = vadd.f32 0.0, %v685
    %687 = vmatprep.mubr.bf16.mxu0 0
    %688 = vmatmul.mubr.bf16.gmra.mrb[0].mxu0 %v571
    %v689 = vpop.f32.mrb[0].mxu0
    %v690 = vadd.f32 0.0, %v689
    %v691 = vpop.f32.mrb[0].mxu0
    %v692 = vadd.f32 0.0, %v691
    %v693 = vpop.f32.mrb[0].mxu0
    %v694 = vadd.f32 0.0, %v693
    %v695 = vpop.f32.mrb[0].mxu0
    %v696 = vadd.f32 0.0, %v695
    %697 = vdwg.mxu0
    %698 = vmatprep.subr.bf16.mxu0 %v590
    %699 = vmatpush1.bf16.msra.mxu0 %v587
    %700 = vmatprep.subr.bf16.mxu0 0
    %701 = vmatpush1.bf16.msra.mxu0 0
    %702 = vmatprep.subr.bf16.mxu0 0
    %703 = vmatpush1.bf16.msra.mxu0 0
    %704 = vmatprep.subr.bf16.mxu0 0
    %705 = vmatpush1.bf16.msra.mxu0 0
    %706 = vmatprep.subr.bf16.mxu0 0
    %707 = vmatpush1.bf16.msra.mxu0 0
    %708 = vmatprep.subr.bf16.mxu0 0
    %709 = vmatpush1.bf16.msra.mxu0 0
    %710 = vmatprep.subr.bf16.mxu0 0
    %711 = vmatpush1.bf16.msra.mxu0 0
    %712 = vmatprep.subr.bf16.mxu0 0
    %713 = vmatpush1.bf16.msra.mxu0 0
    %714 = vmatprep.subr.bf16.mxu0 0
    %715 = vmatpush1.bf16.msra.mxu0 0
    %716 = vmatprep.subr.bf16.mxu0 0
    %717 = vmatpush1.bf16.msra.mxu0 0
    %718 = vmatprep.subr.bf16.mxu0 0
    %719 = vmatpush1.bf16.msra.mxu0 0
    %720 = vmatprep.subr.bf16.mxu0 0
    %721 = vmatpush1.bf16.msra.mxu0 0
    %722 = vmatprep.subr.bf16.mxu0 0
    %723 = vmatpush1.bf16.msra.mxu0 0
    %724 = vmatprep.subr.bf16.mxu0 0
    %725 = vmatpush1.bf16.msra.mxu0 0
    %726 = vmatprep.subr.bf16.mxu0 0
    %727 = vmatpush1.bf16.msra.mxu0 0
    %728 = vmatprep.subr.bf16.mxu0 0
    %729 = vmatpush1.bf16.msra.mxu0 0
    %730 = vmatprep.mubr.bf16.mxu0 0
    %731 = vmatmul.mubr.bf16.gmra.mrb[0].mxu0 %v568
    %v732 = vpop.f32.mrb[0].mxu0
    %v733 = vadd.f32 0.0, %v732
    %v734 = vpop.f32.mrb[0].mxu0
    %v735 = vadd.f32 0.0, %v734
    %v736 = vpop.f32.mrb[0].mxu0
    %v737 = vadd.f32 0.0, %v736
    %v738 = vpop.f32.mrb[0].mxu0
    %v739 = vadd.f32 0.0, %v738
    %740 = vmatprep.mubr.bf16.mxu0 0
    %741 = vmatmul.mubr.bf16.gmra.mrb[0].mxu0 %v571
    %v742 = vpop.f32.mrb[0].mxu0
    %v743 = vadd.f32 0.0, %v742
    %v744 = vpop.f32.mrb[0].mxu0
    %v745 = vadd.f32 0.0, %v744
    %v746 = vpop.f32.mrb[0].mxu0
    %v747 = vadd.f32 0.0, %v746
    %v748 = vpop.f32.mrb[0].mxu0
    %v749 = vadd.f32 0.0, %v748
    %750 = vdwg.mxu0
    %v751 = vpack.c.bf16 %v381, %v380
    %v752 = vpack.c.bf16 %v487, %v486
    %v753 = vld [vmem:[%s6] sm:$0xff]
    %v754 = vld [vmem:[%s6 + $0x8] sm:$0xff]
    %v755 = vld [vmem:[%s6 + $0x10] sm:$0xff]
    %v756 = vld [vmem:[%s6 + $0x18] sm:$0xff]
    %v757 = vld [vmem:[%s6 + $0x20] sm:$0xff]
    %v758 = vld [vmem:[%s6 + $0x28] sm:$0xff]
    %v759 = vld [vmem:[%s6 + $0x30] sm:$0xff]
    %v760 = vld [vmem:[%s6 + $0x38] sm:$0xff]
    %v761 = vld [vmem:[%s6 + $0x40] sm:$0xff]
    %v762 = vld [vmem:[%s6 + $0x48] sm:$0xff]
    %v763 = vld [vmem:[%s6 + $0x50] sm:$0xff]
    %v764 = vld [vmem:[%s6 + $0x58] sm:$0xff]
    %v765 = vld [vmem:[%s6 + $0x60] sm:$0xff]
    %v766 = vld [vmem:[%s6 + $0x68] sm:$0xff]
    %v767 = vld [vmem:[%s6 + $0x70] sm:$0xff]
    %v768 = vld [vmem:[%s6 + $0x78] sm:$0xff]
    %v769 = vld [vmem:[%s6 + $0x80] sm:$0xff]
    %v770 = vld [vmem:[%s6 + $0x88] sm:$0xff]
    %v771 = vld [vmem:[%s6 + $0x90] sm:$0xff]
    %v772 = vld [vmem:[%s6 + $0x98] sm:$0xff]
    %v773 = vld [vmem:[%s6 + $0xa0] sm:$0xff]
    %v774 = vld [vmem:[%s6 + $0xa8] sm:$0xff]
    %v775 = vld [vmem:[%s6 + $0xb0] sm:$0xff]
    %v776 = vld [vmem:[%s6 + $0xb8] sm:$0xff]
    %v801 = vunpack.c.l.b16 %v753
    %v802 = vunpack.c.h.b16 %v753
    %v803 = vunpack.c.l.b16 %v754
    %v804 = vunpack.c.h.b16 %v754
    %v805 = vunpack.c.l.b16 %v755
    %v806 = vunpack.c.h.b16 %v755
    %v807 = vunpack.c.l.b16 %v756
    %v808 = vunpack.c.h.b16 %v756
    %v809 = vunpack.c.l.b16 %v757
    %v810 = vunpack.c.h.b16 %v757
    %v811 = vunpack.c.l.b16 %v758
    %v812 = vunpack.c.h.b16 %v758
    %v813 = vunpack.c.l.b16 %v759
    %v814 = vunpack.c.h.b16 %v759
    %v815 = vunpack.c.l.b16 %v760
    %v816 = vunpack.c.h.b16 %v760
    %v817 = vunpack.c.l.b16 %v761
    %v818 = vunpack.c.h.b16 %v761
    %v819 = vunpack.c.l.b16 %v762
    %v820 = vunpack.c.h.b16 %v762
    %v821 = vunpack.c.l.b16 %v763
    %v822 = vunpack.c.h.b16 %v763
    %v823 = vunpack.c.l.b16 %v764
    %v824 = vunpack.c.h.b16 %v764
    %v825 = vunpack.c.l.b16 %v765
    %v826 = vunpack.c.h.b16 %v765
    %v827 = vunpack.c.l.b16 %v766
    %v828 = vunpack.c.h.b16 %v766
    %v829 = vunpack.c.l.b16 %v767
    %v830 = vunpack.c.h.b16 %v767
    %v831 = vunpack.c.l.b16 %v768
    %v832 = vunpack.c.h.b16 %v768
    %v833 = vunpack.c.l.b16 %v769
    %v834 = vunpack.c.h.b16 %v769
    %v835 = vunpack.c.l.b16 %v770
    %v836 = vunpack.c.h.b16 %v770
    %v837 = vunpack.c.l.b16 %v771
    %v838 = vunpack.c.h.b16 %v771
    %v839 = vunpack.c.l.b16 %v772
    %v840 = vunpack.c.h.b16 %v772
    %v841 = vunpack.c.l.b16 %v773
    %v842 = vunpack.c.h.b16 %v773
    %v843 = vunpack.c.l.b16 %v774
    %v844 = vunpack.c.h.b16 %v774
    %v845 = vunpack.c.l.b16 %v775
    %v846 = vunpack.c.h.b16 %v775
    %v847 = vunpack.c.l.b16 %v776
    %v848 = vunpack.c.h.b16 %v776
    %v849 = vpack.c.b16 %v805, %v801
    %v850 = vpack.c.b16 %v806, %v802
    %v851 = vpack.c.b16 %v807, %v803
    %v852 = vpack.c.b16 %v808, %v804
    %v853 = vpack.c.b16 %v813, %v809
    %v854 = vpack.c.b16 %v814, %v810
    %v855 = vpack.c.b16 %v815, %v811
    %v856 = vpack.c.b16 %v816, %v812
    %v857 = vpack.c.b16 %v821, %v817
    %v858 = vpack.c.b16 %v822, %v818
    %v859 = vpack.c.b16 %v823, %v819
    %v860 = vpack.c.b16 %v824, %v820
    %v861 = vpack.c.b16 %v829, %v825
    %v862 = vpack.c.b16 %v830, %v826
    %v863 = vpack.c.b16 %v831, %v827
    %v864 = vpack.c.b16 %v832, %v828
    %v865 = vpack.c.b16 %v837, %v833
    %v866 = vpack.c.b16 %v838, %v834
    %v867 = vpack.c.b16 %v839, %v835
    %v868 = vpack.c.b16 %v840, %v836
    %v869 = vpack.c.b16 %v845, %v841
    %v870 = vpack.c.b16 %v846, %v842
    %v871 = vpack.c.b16 %v847, %v843
    %v872 = vpack.c.b16 %v848, %v844
    %vm897 = vcmask 785408
    %v899 = vsel %vm897, %v751, 0
    %v902 = vsel %vm897, %v752, 0
    %904 = vmatprep.subr.bf16.mxu0 %v850
    %905 = vmatpush1.bf16.msra.mxu0 %v849
    %906 = vmatprep.subr.bf16.mxu0 %v854
    %907 = vmatpush1.bf16.msra.mxu0 %v853
    %908 = vmatprep.subr.bf16.mxu0 %v858
    %909 = vmatpush1.bf16.msra.mxu0 %v857
    %910 = vmatprep.subr.bf16.mxu0 %v862
    %911 = vmatpush1.bf16.msra.mxu0 %v861
    %912 = vmatprep.subr.bf16.mxu0 %v866
    %913 = vmatpush1.bf16.msra.mxu0 %v865
    %914 = vmatprep.subr.bf16.mxu0 %v870
    %915 = vmatpush1.bf16.msra.mxu0 %v869
    %916 = vmatprep.subr.bf16.mxu0 0
    %917 = vmatpush1.bf16.msra.mxu0 0
    %918 = vmatprep.subr.bf16.mxu0 0
    %919 = vmatpush1.bf16.msra.mxu0 0
    %920 = vmatprep.subr.bf16.mxu0 0
    %921 = vmatpush1.bf16.msra.mxu0 0
    %922 = vmatprep.subr.bf16.mxu0 0
    %923 = vmatpush1.bf16.msra.mxu0 0
    %924 = vmatprep.subr.bf16.mxu0 0
    %925 = vmatpush1.bf16.msra.mxu0 0
    %926 = vmatprep.subr.bf16.mxu0 0
    %927 = vmatpush1.bf16.msra.mxu0 0
    %928 = vmatprep.subr.bf16.mxu0 0
    %929 = vmatpush1.bf16.msra.mxu0 0
    %930 = vmatprep.subr.bf16.mxu0 0
    %931 = vmatpush1.bf16.msra.mxu0 0
    %932 = vmatprep.subr.bf16.mxu0 0
    %933 = vmatpush1.bf16.msra.mxu0 0
    %934 = vmatprep.subr.bf16.mxu0 0
    %935 = vmatpush1.bf16.msra.mxu0 0
    %936 = vmatprep.mubr.bf16.mxu0 0
    %937 = vmatmul.mubr.bf16.gmra.mrb[0].mxu0 %v899
    %v938 = vpop.f32.mrb[0].mxu0
    %v939 = vadd.f32 0.0, %v938
    %v940 = vpop.f32.mrb[0].mxu0
    %v941 = vadd.f32 0.0, %v940
    %v942 = vpop.f32.mrb[0].mxu0
    %v943 = vadd.f32 0.0, %v942
    %v944 = vpop.f32.mrb[0].mxu0
    %v945 = vadd.f32 0.0, %v944
    %946 = vmatprep.mubr.bf16.mxu0 0
    %947 = vmatmul.mubr.bf16.gmra.mrb[0].mxu0 %v902
    %v948 = vpop.f32.mrb[0].mxu0
    %v949 = vadd.f32 0.0, %v948
    %v950 = vpop.f32.mrb[0].mxu0
    %v951 = vadd.f32 0.0, %v950
    %v952 = vpop.f32.mrb[0].mxu0
    %v953 = vadd.f32 0.0, %v952
    %v954 = vpop.f32.mrb[0].mxu0
    %v955 = vadd.f32 0.0, %v954
    %956 = vdwg.mxu0
    %957 = vmatprep.subr.bf16.mxu0 %v852
    %958 = vmatpush1.bf16.msra.mxu0 %v851
    %959 = vmatprep.subr.bf16.mxu0 %v856
    %960 = vmatpush1.bf16.msra.mxu0 %v855
    %961 = vmatprep.subr.bf16.mxu0 %v860
    %962 = vmatpush1.bf16.msra.mxu0 %v859
    %963 = vmatprep.subr.bf16.mxu0 %v864
    %964 = vmatpush1.bf16.msra.mxu0 %v863
    %965 = vmatprep.subr.bf16.mxu0 %v868
    %966 = vmatpush1.bf16.msra.mxu0 %v867
    %967 = vmatprep.subr.bf16.mxu0 %v872
    %968 = vmatpush1.bf16.msra.mxu0 %v871
    %969 = vmatprep.subr.bf16.mxu0 0
    %970 = vmatpush1.bf16.msra.mxu0 0
    %971 = vmatprep.subr.bf16.mxu0 0
    %972 = vmatpush1.bf16.msra.mxu0 0
    %973 = vmatprep.subr.bf16.mxu0 0
    %974 = vmatpush1.bf16.msra.mxu0 0
    %975 = vmatprep.subr.bf16.mxu0 0
    %976 = vmatpush1.bf16.msra.mxu0 0
    %977 = vmatprep.subr.bf16.mxu0 0
    %978 = vmatpush1.bf16.msra.mxu0 0
    %979 = vmatprep.subr.bf16.mxu0 0
    %980 = vmatpush1.bf16.msra.mxu0 0
    %981 = vmatprep.subr.bf16.mxu0 0
    %982 = vmatpush1.bf16.msra.mxu0 0
    %983 = vmatprep.subr.bf16.mxu0 0
    %984 = vmatpush1.bf16.msra.mxu0 0
    %985 = vmatprep.subr.bf16.mxu0 0
    %986 = vmatpush1.bf16.msra.mxu0 0
    %987 = vmatprep.subr.bf16.mxu0 0
    %988 = vmatpush1.bf16.msra.mxu0 0
    %989 = vmatprep.mubr.bf16.mxu0 0
    %990 = vmatmul.mubr.bf16.gmra.mrb[0].mxu0 %v899
    %v991 = vpop.f32.mrb[0].mxu0
    %v992 = vadd.f32 0.0, %v991
    %v993 = vpop.f32.mrb[0].mxu0
    %v994 = vadd.f32 0.0, %v993
    %v995 = vpop.f32.mrb[0].mxu0
    %v996 = vadd.f32 0.0, %v995
    %v997 = vpop.f32.mrb[0].mxu0
    %v998 = vadd.f32 0.0, %v997
    %999 = vmatprep.mubr.bf16.mxu0 0
    %1000 = vmatmul.mubr.bf16.gmra.mrb[0].mxu0 %v902
    %v1001 = vpop.f32.mrb[0].mxu0
    %v1002 = vadd.f32 0.0, %v1001
    %v1003 = vpop.f32.mrb[0].mxu0
    %v1004 = vadd.f32 0.0, %v1003
    %v1005 = vpop.f32.mrb[0].mxu0
    %v1006 = vadd.f32 0.0, %v1005
    %v1007 = vpop.f32.mrb[0].mxu0
    %v1008 = vadd.f32 0.0, %v1007
    %1009 = vdwg.mxu0
    %v1010 = vadd.f32 %v627, %v939
    %v1011 = vadd.f32 %v629, %v941
    %v1012 = vadd.f32 %v631, %v943
    %v1013 = vadd.f32 %v633, %v945
    %v1014 = vadd.f32 %v637, %v949
    %v1015 = vadd.f32 %v639, %v951
    %v1016 = vadd.f32 %v641, %v953
    %v1017 = vadd.f32 %v643, %v955
    %v1018 = vmul.f32 %v1010, %v488
    %v1019 = vmul.f32 %v1011, %v489
    %v1020 = vmul.f32 %v1012, %v490
    %v1021 = vmul.f32 %v1013, %v491
    %v1022 = vmul.f32 %v1014, %v488
    %v1023 = vmul.f32 %v1015, %v489
    %v1024 = vmul.f32 %v1016, %v490
    %v1025 = vmul.f32 %v1017, %v491
    %v1026 = vpack.c.bf16 %v1020, %v1018
    %v1027 = vpack.c.bf16 %v1021, %v1019
    %v1028 = vpack.c.bf16 %v1024, %v1022
    %v1029 = vpack.c.bf16 %v1025, %v1023
    %v1062 = vunpack.c.l.b16 %v498
    %v1063 = vunpack.c.l.b16 %v499
    %v1064 = vunpack.c.l.b16 %v500
    %v1065 = vunpack.c.l.b16 %v501
    %v1066 = vunpack.c.l.b16 %v502
    %v1067 = vunpack.c.l.b16 %v503
    %v1068 = vunpack.c.l.b16 %v504
    %v1069 = vunpack.c.l.b16 %v505
    %v1070 = vunpack.c.l.b16 %v506
    %v1071 = vunpack.c.l.b16 %v507
    %v1072 = vunpack.c.l.b16 %v508
    %v1073 = vunpack.c.l.b16 %v509
    %v1074 = vunpack.c.l.b16 %v510
    %v1075 = vunpack.c.l.b16 %v511
    %v1076 = vunpack.c.l.b16 %v512
    %v1077 = vunpack.c.l.b16 %v513
    %v1078 = vunpack.c.l.b16 %v514
    %v1079 = vunpack.c.l.b16 %v515
    %v1080 = vunpack.c.l.b16 %v516
    %v1081 = vunpack.c.l.b16 %v517
    %v1082 = vunpack.c.l.b16 %v518
    %v1083 = vunpack.c.l.b16 %v519
    %v1084 = vunpack.c.l.b16 %v520
    %v1085 = vunpack.c.l.b16 %v521
    %v1086 = vunpack.c.l.b16 %v522
    %v1087 = vunpack.c.l.b16 %v523
    %v1088 = vunpack.c.l.b16 %v524
    %v1089 = vunpack.c.l.b16 %v525
    %v1090 = vunpack.c.l.b16 %v526
    %v1091 = vunpack.c.l.b16 %v527
    %v1092 = vunpack.c.l.b16 %v528
    %v1093 = vunpack.c.l.b16 %v529
    %v1094 = vpack.c.b16 %v1063, %v1062
    %v1095 = vpack.c.b16 %v1065, %v1064
    %v1096 = vpack.c.b16 %v1067, %v1066
    %v1097 = vpack.c.b16 %v1069, %v1068
    %v1098 = vpack.c.b16 %v1071, %v1070
    %v1099 = vpack.c.b16 %v1073, %v1072
    %v1100 = vpack.c.b16 %v1075, %v1074
    %v1101 = vpack.c.b16 %v1077, %v1076
    %v1102 = vpack.c.b16 %v1079, %v1078
    %v1103 = vpack.c.b16 %v1081, %v1080
    %v1104 = vpack.c.b16 %v1083, %v1082
    %v1105 = vpack.c.b16 %v1085, %v1084
    %v1106 = vpack.c.b16 %v1087, %v1086
    %v1107 = vpack.c.b16 %v1089, %v1088
    %v1108 = vpack.c.b16 %v1091, %v1090
    %v1109 = vpack.c.b16 %v1093, %v1092
    %1126 = vmatprep.subr.bf16.mxu0 0
    %1127 = vmatpush1.bf16.msra.mxu0 %v1094
    %1128 = vmatprep.subr.bf16.mxu0 0
    %1129 = vmatpush1.bf16.msra.mxu0 %v1095
    %1130 = vmatprep.subr.bf16.mxu0 0
    %1131 = vmatpush1.bf16.msra.mxu0 %v1096
    %1132 = vmatprep.subr.bf16.mxu0 0
    %1133 = vmatpush1.bf16.msra.mxu0 %v1097
    %1134 = vmatprep.subr.bf16.mxu0 0
    %1135 = vmatpush1.bf16.msra.mxu0 %v1098
    %1136 = vmatprep.subr.bf16.mxu0 0
    %1137 = vmatpush1.bf16.msra.mxu0 %v1099
    %1138 = vmatprep.subr.bf16.mxu0 0
    %1139 = vmatpush1.bf16.msra.mxu0 %v1100
    %1140 = vmatprep.subr.bf16.mxu0 0
    %1141 = vmatpush1.bf16.msra.mxu0 %v1101
    %1142 = vmatprep.subr.bf16.mxu0 0
    %1143 = vmatpush1.bf16.msra.mxu0 %v1102
    %1144 = vmatprep.subr.bf16.mxu0 0
    %1145 = vmatpush1.bf16.msra.mxu0 %v1103
    %1146 = vmatprep.subr.bf16.mxu0 0
    %1147 = vmatpush1.bf16.msra.mxu0 %v1104
    %1148 = vmatprep.subr.bf16.mxu0 0
    %1149 = vmatpush1.bf16.msra.mxu0 %v1105
    %1150 = vmatprep.subr.bf16.mxu0 0
    %1151 = vmatpush1.bf16.msra.mxu0 %v1106
    %1152 = vmatprep.subr.bf16.mxu0 0
    %1153 = vmatpush1.bf16.msra.mxu0 %v1107
    %1154 = vmatprep.subr.bf16.mxu0 0
    %1155 = vmatpush1.bf16.msra.mxu0 %v1108
    %1156 = vmatprep.subr.bf16.mxu0 0
    %1157 = vmatpush1.bf16.msra.mxu0 %v1109
    %1158 = vmatprep.mubr.bf16.mxu0 %v1027
    %1159 = vmatmul.mubr.bf16.gmra.mrb[0].mxu0 %v1026
    %v1160 = vpop.f32.mrb[0].mxu0
    %v1161 = vadd.f32 %v492, %v1160
    %v1162 = vpop.f32.mrb[0].mxu0
    %v1163 = vpop.f32.mrb[0].mxu0
    %v1164 = vadd.f32 %v493, %v1163
    %v1165 = vpop.f32.mrb[0].mxu0
    %1166 = vmatprep.mubr.bf16.mxu0 %v1029
    %1167 = vmatmul.mubr.bf16.gmra.mrb[0].mxu0 %v1028
    %v1168 = vpop.f32.mrb[0].mxu0
    %v1169 = vadd.f32 %v492, %v1168
    %v1170 = vpop.f32.mrb[0].mxu0
    %v1171 = vpop.f32.mrb[0].mxu0
    %v1172 = vadd.f32 %v493, %v1171
    %v1173 = vpop.f32.mrb[0].mxu0
    %1174 = vdwg.mxu0
    %v1175 = vxor.u32 %v1161, 2147483648
    %v1176 = vxor.u32 %v1164, 2147483648
    %v1177 = vxor.u32 %v1169, 2147483648
    %v1178 = vxor.u32 %v1172, 2147483648
    %v1179 = vmul.f32 %v1175, 1.442695
    %v1180 = vpow.pop %v1179
    %v1181 = vmul.f32 %v1176, 1.442695
    %v1182 = vpow.pop %v1181
    %v1183 = vmul.f32 %v1177, 1.442695
    %v1184 = vpow.pop %v1183
    %v1185 = vmul.f32 %v1178, 1.442695
    %v1186 = vpow.pop %v1185
    %v1187 = vadd.f32 %v1180, 1.0
    %v1188 = vadd.f32 %v1182, 1.0
    %v1189 = vadd.f32 %v1184, 1.0
    %v1190 = vadd.f32 %v1186, 1.0
    %v1191 = vrcp.pop %v1187
    %v1192 = vmul.f32 1.0, %v1191
    %v1193 = vrcp.pop %v1188
    %v1194 = vmul.f32 1.0, %v1193
    %v1195 = vrcp.pop %v1189
    %v1196 = vmul.f32 1.0, %v1195
    %v1197 = vrcp.pop %v1190
    %v1198 = vmul.f32 1.0, %v1197
    %v1199 = vadd.f32 %v680, %v992
    %v1200 = vadd.f32 %v682, %v994
    %v1201 = vadd.f32 %v684, %v996
    %v1202 = vadd.f32 %v686, %v998
    %v1203 = vadd.f32 %v690, %v1002
    %v1204 = vadd.f32 %v692, %v1004
    %v1205 = vadd.f32 %v694, %v1006
    %v1206 = vadd.f32 %v696, %v1008
    %v1207 = vmul.f32 %v1199, %v488
    %v1208 = vmul.f32 %v1200, %v489
    %v1209 = vmul.f32 %v1201, %v490
    %v1210 = vmul.f32 %v1202, %v491
    %v1211 = vmul.f32 %v1203, %v488
    %v1212 = vmul.f32 %v1204, %v489
    %v1213 = vmul.f32 %v1205, %v490
    %v1214 = vmul.f32 %v1206, %v491
    %v1215 = vpack.c.bf16 %v1209, %v1207
    %v1216 = vpack.c.bf16 %v1210, %v1208
    %v1217 = vpack.c.bf16 %v1213, %v1211
    %v1218 = vpack.c.bf16 %v1214, %v1212
    %1219 = vmatprep.subr.bf16.mxu0 0
    %1220 = vmatpush1.bf16.msra.mxu0 %v1094
    %1221 = vmatprep.subr.bf16.mxu0 0
    %1222 = vmatpush1.bf16.msra.mxu0 %v1095
    %1223 = vmatprep.subr.bf16.mxu0 0
    %1224 = vmatpush1.bf16.msra.mxu0 %v1096
    %1225 = vmatprep.subr.bf16.mxu0 0
    %1226 = vmatpush1.bf16.msra.mxu0 %v1097
    %1227 = vmatprep.subr.bf16.mxu0 0
    %1228 = vmatpush1.bf16.msra.mxu0 %v1098
    %1229 = vmatprep.subr.bf16.mxu0 0
    %1230 = vmatpush1.bf16.msra.mxu0 %v1099
    %1231 = vmatprep.subr.bf16.mxu0 0
    %1232 = vmatpush1.bf16.msra.mxu0 %v1100
    %1233 = vmatprep.subr.bf16.mxu0 0
    %1234 = vmatpush1.bf16.msra.mxu0 %v1101
    %1235 = vmatprep.subr.bf16.mxu0 0
    %1236 = vmatpush1.bf16.msra.mxu0 %v1102
    %1237 = vmatprep.subr.bf16.mxu0 0
    %1238 = vmatpush1.bf16.msra.mxu0 %v1103
    %1239 = vmatprep.subr.bf16.mxu0 0
    %1240 = vmatpush1.bf16.msra.mxu0 %v1104
    %1241 = vmatprep.subr.bf16.mxu0 0
    %1242 = vmatpush1.bf16.msra.mxu0 %v1105
    %1243 = vmatprep.subr.bf16.mxu0 0
    %1244 = vmatpush1.bf16.msra.mxu0 %v1106
    %1245 = vmatprep.subr.bf16.mxu0 0
    %1246 = vmatpush1.bf16.msra.mxu0 %v1107
    %1247 = vmatprep.subr.bf16.mxu0 0
    %1248 = vmatpush1.bf16.msra.mxu0 %v1108
    %1249 = vmatprep.subr.bf16.mxu0 0
    %1250 = vmatpush1.bf16.msra.mxu0 %v1109
    %1251 = vmatprep.mubr.bf16.mxu0 %v1216
    %1252 = vmatmul.mubr.bf16.gmra.mrb[0].mxu0 %v1215
    %v1253 = vpop.f32.mrb[0].mxu0
    %v1254 = vadd.f32 %v494, %v1253
    %v1255 = vpop.f32.mrb[0].mxu0
    %v1256 = vpop.f32.mrb[0].mxu0
    %v1257 = vadd.f32 %v495, %v1256
    %v1258 = vpop.f32.mrb[0].mxu0
    %1259 = vmatprep.mubr.bf16.mxu0 %v1218
    %1260 = vmatmul.mubr.bf16.gmra.mrb[0].mxu0 %v1217
    %v1261 = vpop.f32.mrb[0].mxu0
    %v1262 = vadd.f32 %v494, %v1261
    %v1263 = vpop.f32.mrb[0].mxu0
    %v1264 = vpop.f32.mrb[0].mxu0
    %v1265 = vadd.f32 %v495, %v1264
    %v1266 = vpop.f32.mrb[0].mxu0
    %1267 = vdwg.mxu0
    %v1268 = vxor.u32 %v1254, 2147483648
    %v1269 = vxor.u32 %v1257, 2147483648
    %v1270 = vxor.u32 %v1262, 2147483648
    %v1271 = vxor.u32 %v1265, 2147483648
    %v1272 = vmul.f32 %v1268, 1.442695
    %v1273 = vpow.pop %v1272
    %v1274 = vmul.f32 %v1269, 1.442695
    %v1275 = vpow.pop %v1274
    %v1276 = vmul.f32 %v1270, 1.442695
    %v1277 = vpow.pop %v1276
    %v1278 = vmul.f32 %v1271, 1.442695
    %v1279 = vpow.pop %v1278
    %v1280 = vadd.f32 %v1273, 1.0
    %v1281 = vadd.f32 %v1275, 1.0
    %v1282 = vadd.f32 %v1277, 1.0
    %v1283 = vadd.f32 %v1279, 1.0
    %v1284 = vrcp.pop %v1280
    %v1285 = vmul.f32 1.0, %v1284
    %v1286 = vrcp.pop %v1281
    %v1287 = vmul.f32 1.0, %v1286
    %v1288 = vrcp.pop %v1282
    %v1289 = vmul.f32 1.0, %v1288
    %v1290 = vrcp.pop %v1283
    %v1291 = vmul.f32 1.0, %v1290
    %v1292 = vmul.f32 %v1192, %v530
    %v1293 = vmul.f32 %v1194, %v531
    %v1294 = vmul.f32 %v1196, %v532
    %v1295 = vmul.f32 %v1198, %v533
    %v1296 = vpack.c.bf16 %v1293, %v1292
    %1297 = vmatprep.subr.bf16.mxu0 0
    %1298 = vmatpush1.bf16.msra.mxu0 %v1296
    %1299 = vmatprep.subr.bf16.mxu0 0
    %1300 = vmatpush1.bf16.msra.mxu0 0
    %1301 = vmatprep.subr.bf16.mxu0 0
    %1302 = vmatpush1.bf16.msra.mxu0 0
    %1303 = vmatprep.subr.bf16.mxu0 0
    %1304 = vmatpush1.bf16.msra.mxu0 0
    %1305 = vmatprep.subr.bf16.mxu0 0
    %1306 = vmatpush1.bf16.msra.mxu0 0
    %1307 = vmatprep.subr.bf16.mxu0 0
    %1308 = vmatpush1.bf16.msra.mxu0 0
    %1309 = vmatprep.subr.bf16.mxu0 0
    %1310 = vmatpush1.bf16.msra.mxu0 0
    %1311 = vmatprep.subr.bf16.mxu0 0
    %1312 = vmatpush1.bf16.msra.mxu0 0
    %1313 = vmatprep.subr.bf16.mxu0 0
    %1314 = vmatpush1.bf16.msra.mxu0 0
    %1315 = vmatprep.subr.bf16.mxu0 0
    %1316 = vmatpush1.bf16.msra.mxu0 0
    %1317 = vmatprep.subr.bf16.mxu0 0
    %1318 = vmatpush1.bf16.msra.mxu0 0
    %1319 = vmatprep.subr.bf16.mxu0 0
    %1320 = vmatpush1.bf16.msra.mxu0 0
    %1321 = vmatprep.subr.bf16.mxu0 0
    %1322 = vmatpush1.bf16.msra.mxu0 0
    %1323 = vmatprep.subr.bf16.mxu0 0
    %1324 = vmatpush1.bf16.msra.mxu0 0
    %1325 = vmatprep.subr.bf16.mxu0 0
    %1326 = vmatpush1.bf16.msra.mxu0 0
    %1327 = vmatprep.subr.bf16.mxu0 0
    %1328 = vmatpush1.bf16.msra.mxu0 0
    %1329 = vmatprep.mubr.bf16.mxu0 0
    %1330 = vmatmul.mubr.bf16.gmra.mrb[0].mxu0 %v52
    %v1331 = vpop.f32.mrb[0].mxu0
    %v1332 = vadd.f32 0.0, %v1331
    %v1333 = vpop.f32.mrb[0].mxu0
    %v1334 = vpop.f32.mrb[0].mxu0
    %v1335 = vadd.f32 0.0, %v1334
    %v1336 = vpop.f32.mrb[0].mxu0
    %1337 = vdwg.mxu0
    %1338 = vmatprep.subr.bf16.mxu0 0
    %1339 = vmatpush1.bf16.msra.mxu0 %v1296
    %1340 = vmatprep.subr.bf16.mxu0 0
    %1341 = vmatpush1.bf16.msra.mxu0 0
    %1342 = vmatprep.subr.bf16.mxu0 0
    %1343 = vmatpush1.bf16.msra.mxu0 0
    %1344 = vmatprep.subr.bf16.mxu0 0
    %1345 = vmatpush1.bf16.msra.mxu0 0
    %1346 = vmatprep.subr.bf16.mxu0 0
    %1347 = vmatpush1.bf16.msra.mxu0 0
    %1348 = vmatprep.subr.bf16.mxu0 0
    %1349 = vmatpush1.bf16.msra.mxu0 0
    %1350 = vmatprep.subr.bf16.mxu0 0
    %1351 = vmatpush1.bf16.msra.mxu0 0
    %1352 = vmatprep.subr.bf16.mxu0 0
    %1353 = vmatpush1.bf16.msra.mxu0 0
    %1354 = vmatprep.subr.bf16.mxu0 0
    %1355 = vmatpush1.bf16.msra.mxu0 0
    %1356 = vmatprep.subr.bf16.mxu0 0
    %1357 = vmatpush1.bf16.msra.mxu0 0
    %1358 = vmatprep.subr.bf16.mxu0 0
    %1359 = vmatpush1.bf16.msra.mxu0 0
    %1360 = vmatprep.subr.bf16.mxu0 0
    %1361 = vmatpush1.bf16.msra.mxu0 0
    %1362 = vmatprep.subr.bf16.mxu0 0
    %1363 = vmatpush1.bf16.msra.mxu0 0
    %1364 = vmatprep.subr.bf16.mxu0 0
    %1365 = vmatpush1.bf16.msra.mxu0 0
    %1366 = vmatprep.subr.bf16.mxu0 0
    %1367 = vmatpush1.bf16.msra.mxu0 0
    %1368 = vmatprep.subr.bf16.mxu0 0
    %1369 = vmatpush1.bf16.msra.mxu0 0
    %1370 = vmatprep.mubr.bf16.mxu0 0
    %1371 = vmatmul.mubr.bf16.gmra.mrb[0].mxu0 %v104
    %v1372 = vpop.f32.mrb[0].mxu0
    %v1373 = vadd.f32 0.0, %v1372
    %v1374 = vpop.f32.mrb[0].mxu0
    %v1375 = vpop.f32.mrb[0].mxu0
    %v1376 = vadd.f32 0.0, %v1375
    %v1377 = vpop.f32.mrb[0].mxu0
    %1378 = vdwg.mxu0
    %1381 = vrot.lane.b32.xlu0 %v1332, 32
    %v1382 = vpop.permute.xlu0 %1381
    %1383 = vrot.lane.b32.xlu0 %v1335, 32
    %v1384 = vpop.permute.xlu0 %1383
    %1389 = vrot.lane.b32.xlu0 %v1373, 64
    %v1390 = vpop.permute.xlu0 %1389
    %1391 = vrot.lane.b32.xlu0 %v1376, 64
    %v1392 = vpop.permute.xlu0 %1391
    %v1395 = vsel %vm376, %v1292, %v1382
    %v1396 = vsel %vm376, %v1293, %v1384
    %v1397 = vsel %vm379, %v1395, %v1390
    %v1398 = vsel %vm379, %v1396, %v1392
    %v1399 = vpack.c.bf16 %v1295, %v1294
    %1400 = vmatprep.subr.bf16.mxu0 0
    %1401 = vmatpush1.bf16.msra.mxu0 %v1399
    %1402 = vmatprep.subr.bf16.mxu0 0
    %1403 = vmatpush1.bf16.msra.mxu0 0
    %1404 = vmatprep.subr.bf16.mxu0 0
    %1405 = vmatpush1.bf16.msra.mxu0 0
    %1406 = vmatprep.subr.bf16.mxu0 0
    %1407 = vmatpush1.bf16.msra.mxu0 0
    %1408 = vmatprep.subr.bf16.mxu0 0
    %1409 = vmatpush1.bf16.msra.mxu0 0
    %1410 = vmatprep.subr.bf16.mxu0 0
    %1411 = vmatpush1.bf16.msra.mxu0 0
    %1412 = vmatprep.subr.bf16.mxu0 0
    %1413 = vmatpush1.bf16.msra.mxu0 0
    %1414 = vmatprep.subr.bf16.mxu0 0
    %1415 = vmatpush1.bf16.msra.mxu0 0
    %1416 = vmatprep.subr.bf16.mxu0 0
    %1417 = vmatpush1.bf16.msra.mxu0 0
    %1418 = vmatprep.subr.bf16.mxu0 0
    %1419 = vmatpush1.bf16.msra.mxu0 0
    %1420 = vmatprep.subr.bf16.mxu0 0
    %1421 = vmatpush1.bf16.msra.mxu0 0
    %1422 = vmatprep.subr.bf16.mxu0 0
    %1423 = vmatpush1.bf16.msra.mxu0 0
    %1424 = vmatprep.subr.bf16.mxu0 0
    %1425 = vmatpush1.bf16.msra.mxu0 0
    %1426 = vmatprep.subr.bf16.mxu0 0
    %1427 = vmatpush1.bf16.msra.mxu0 0
    %1428 = vmatprep.subr.bf16.mxu0 0
    %1429 = vmatpush1.bf16.msra.mxu0 0
    %1430 = vmatprep.subr.bf16.mxu0 0
    %1431 = vmatpush1.bf16.msra.mxu0 0
    %1432 = vmatprep.mubr.bf16.mxu0 0
    %1433 = vmatmul.mubr.bf16.gmra.mrb[0].mxu0 %v52
    %v1434 = vpop.f32.mrb[0].mxu0
    %v1435 = vadd.f32 0.0, %v1434
    %v1436 = vpop.f32.mrb[0].mxu0
    %v1437 = vpop.f32.mrb[0].mxu0
    %v1438 = vadd.f32 0.0, %v1437
    %v1439 = vpop.f32.mrb[0].mxu0
    %1440 = vdwg.mxu0
    %1441 = vmatprep.subr.bf16.mxu0 0
    %1442 = vmatpush1.bf16.msra.mxu0 %v1399
    %1443 = vmatprep.subr.bf16.mxu0 0
    %1444 = vmatpush1.bf16.msra.mxu0 0
    %1445 = vmatprep.subr.bf16.mxu0 0
    %1446 = vmatpush1.bf16.msra.mxu0 0
    %1447 = vmatprep.subr.bf16.mxu0 0
    %1448 = vmatpush1.bf16.msra.mxu0 0
    %1449 = vmatprep.subr.bf16.mxu0 0
    %1450 = vmatpush1.bf16.msra.mxu0 0
    %1451 = vmatprep.subr.bf16.mxu0 0
    %1452 = vmatpush1.bf16.msra.mxu0 0
    %1453 = vmatprep.subr.bf16.mxu0 0
    %1454 = vmatpush1.bf16.msra.mxu0 0
    %1455 = vmatprep.subr.bf16.mxu0 0
    %1456 = vmatpush1.bf16.msra.mxu0 0
    %1457 = vmatprep.subr.bf16.mxu0 0
    %1458 = vmatpush1.bf16.msra.mxu0 0
    %1459 = vmatprep.subr.bf16.mxu0 0
    %1460 = vmatpush1.bf16.msra.mxu0 0
    %1461 = vmatprep.subr.bf16.mxu0 0
    %1462 = vmatpush1.bf16.msra.mxu0 0
    %1463 = vmatprep.subr.bf16.mxu0 0
    %1464 = vmatpush1.bf16.msra.mxu0 0
    %1465 = vmatprep.subr.bf16.mxu0 0
    %1466 = vmatpush1.bf16.msra.mxu0 0
    %1467 = vmatprep.subr.bf16.mxu0 0
    %1468 = vmatpush1.bf16.msra.mxu0 0
    %1469 = vmatprep.subr.bf16.mxu0 0
    %1470 = vmatpush1.bf16.msra.mxu0 0
    %1471 = vmatprep.subr.bf16.mxu0 0
    %1472 = vmatpush1.bf16.msra.mxu0 0
    %1473 = vmatprep.mubr.bf16.mxu0 0
    %1474 = vmatmul.mubr.bf16.gmra.mrb[0].mxu0 %v104
    %v1475 = vpop.f32.mrb[0].mxu0
    %v1476 = vadd.f32 0.0, %v1475
    %v1477 = vpop.f32.mrb[0].mxu0
    %v1478 = vpop.f32.mrb[0].mxu0
    %v1479 = vadd.f32 0.0, %v1478
    %v1480 = vpop.f32.mrb[0].mxu0
    %1481 = vdwg.mxu0
    %1484 = vrot.lane.b32.xlu0 %v1435, 32
    %v1485 = vpop.permute.xlu0 %1484
    %1486 = vrot.lane.b32.xlu0 %v1438, 32
    %v1487 = vpop.permute.xlu0 %1486
    %1492 = vrot.lane.b32.xlu0 %v1476, 64
    %v1493 = vpop.permute.xlu0 %1492
    %1494 = vrot.lane.b32.xlu0 %v1479, 64
    %v1495 = vpop.permute.xlu0 %1494
    %v1498 = vsel %vm376, %v1294, %v1485
    %v1499 = vsel %vm376, %v1295, %v1487
    %v1500 = vsel %vm379, %v1498, %v1493
    %v1501 = vsel %vm379, %v1499, %v1495
    %v1502 = vpack.c.bf16 %v1398, %v1397
    %v1503 = vpack.c.bf16 %v1501, %v1500
    %v1504 = vld [vmem:[%s7] sm:$0xff]
    %v1505 = vld [vmem:[%s7 + $0x8] sm:$0xff]
    %v1506 = vld [vmem:[%s7 + $0x10] sm:$0xff]
    %v1507 = vld [vmem:[%s7 + $0x18] sm:$0xff]
    %v1508 = vld [vmem:[%s7 + $0x20] sm:$0xff]
    %v1509 = vld [vmem:[%s7 + $0x28] sm:$0xff]
    %v1510 = vld [vmem:[%s7 + $0x30] sm:$0xff]
    %v1511 = vld [vmem:[%s7 + $0x38] sm:$0xff]
    %v1512 = vld [vmem:[%s7 + $0x40] sm:$0xff]
    %v1513 = vld [vmem:[%s7 + $0x48] sm:$0xff]
    %v1514 = vld [vmem:[%s7 + $0x50] sm:$0xff]
    %v1515 = vld [vmem:[%s7 + $0x58] sm:$0xff]
    %v1528 = vunpack.c.l.b16 %v1504
    %v1529 = vunpack.c.h.b16 %v1504
    %v1530 = vunpack.c.l.b16 %v1505
    %v1531 = vunpack.c.h.b16 %v1505
    %v1532 = vunpack.c.l.b16 %v1506
    %v1533 = vunpack.c.h.b16 %v1506
    %v1534 = vunpack.c.l.b16 %v1507
    %v1535 = vunpack.c.h.b16 %v1507
    %v1536 = vunpack.c.l.b16 %v1508
    %v1537 = vunpack.c.h.b16 %v1508
    %v1538 = vunpack.c.l.b16 %v1509
    %v1539 = vunpack.c.h.b16 %v1509
    %v1540 = vunpack.c.l.b16 %v1510
    %v1541 = vunpack.c.h.b16 %v1510
    %v1542 = vunpack.c.l.b16 %v1511
    %v1543 = vunpack.c.h.b16 %v1511
    %v1544 = vunpack.c.l.b16 %v1512
    %v1545 = vunpack.c.h.b16 %v1512
    %v1546 = vunpack.c.l.b16 %v1513
    %v1547 = vunpack.c.h.b16 %v1513
    %v1548 = vunpack.c.l.b16 %v1514
    %v1549 = vunpack.c.h.b16 %v1514
    %v1550 = vunpack.c.l.b16 %v1515
    %v1551 = vunpack.c.h.b16 %v1515
    %v1552 = vpack.c.b16 %v1530, %v1528
    %v1553 = vpack.c.b16 %v1531, %v1529
    %v1554 = vpack.c.b16 %v1534, %v1532
    %v1555 = vpack.c.b16 %v1535, %v1533
    %v1556 = vpack.c.b16 %v1538, %v1536
    %v1557 = vpack.c.b16 %v1539, %v1537
    %v1558 = vpack.c.b16 %v1542, %v1540
    %v1559 = vpack.c.b16 %v1543, %v1541
    %v1560 = vpack.c.b16 %v1546, %v1544
    %v1561 = vpack.c.b16 %v1547, %v1545
    %v1562 = vpack.c.b16 %v1550, %v1548
    %v1563 = vpack.c.b16 %v1551, %v1549
    %v1577 = vsel %vm897, %v1502, 0
    %v1580 = vsel %vm897, %v1503, 0
    %1582 = vmatprep.subr.bf16.mxu0 %v1553
    %1583 = vmatpush1.bf16.msra.mxu0 %v1552
    %1584 = vmatprep.subr.bf16.mxu0 %v1555
    %1585 = vmatpush1.bf16.msra.mxu0 %v1554
    %1586 = vmatprep.subr.bf16.mxu0 %v1557
    %1587 = vmatpush1.bf16.msra.mxu0 %v1556
    %1588 = vmatprep.subr.bf16.mxu0 %v1559
    %1589 = vmatpush1.bf16.msra.mxu0 %v1558
    %1590 = vmatprep.subr.bf16.mxu0 %v1561
    %1591 = vmatpush1.bf16.msra.mxu0 %v1560
    %1592 = vmatprep.subr.bf16.mxu0 %v1563
    %1593 = vmatpush1.bf16.msra.mxu0 %v1562
    %1594 = vmatprep.subr.bf16.mxu0 0
    %1595 = vmatpush1.bf16.msra.mxu0 0
    %1596 = vmatprep.subr.bf16.mxu0 0
    %1597 = vmatpush1.bf16.msra.mxu0 0
    %1598 = vmatprep.subr.bf16.mxu0 0
    %1599 = vmatpush1.bf16.msra.mxu0 0
    %1600 = vmatprep.subr.bf16.mxu0 0
    %1601 = vmatpush1.bf16.msra.mxu0 0
    %1602 = vmatprep.subr.bf16.mxu0 0
    %1603 = vmatpush1.bf16.msra.mxu0 0
    %1604 = vmatprep.subr.bf16.mxu0 0
    %1605 = vmatpush1.bf16.msra.mxu0 0
    %1606 = vmatprep.subr.bf16.mxu0 0
    %1607 = vmatpush1.bf16.msra.mxu0 0
    %1608 = vmatprep.subr.bf16.mxu0 0
    %1609 = vmatpush1.bf16.msra.mxu0 0
    %1610 = vmatprep.subr.bf16.mxu0 0
    %1611 = vmatpush1.bf16.msra.mxu0 0
    %1612 = vmatprep.subr.bf16.mxu0 0
    %1613 = vmatpush1.bf16.msra.mxu0 0
    %1614 = vmatprep.mubr.bf16.mxu0 0
    %1615 = vmatmul.mubr.bf16.gmra.mrb[0].mxu0 %v1577
    %v1616 = vpop.f32.mrb[0].mxu0
    %v1617 = vadd.f32 0.0, %v1616
    %v1618 = vpop.f32.mrb[0].mxu0
    %v1619 = vadd.f32 0.0, %v1618
    %v1620 = vpop.f32.mrb[0].mxu0
    %v1621 = vadd.f32 0.0, %v1620
    %v1622 = vpop.f32.mrb[0].mxu0
    %v1623 = vadd.f32 0.0, %v1622
    %1624 = vmatprep.mubr.bf16.mxu0 0
    %1625 = vmatmul.mubr.bf16.gmra.mrb[0].mxu0 %v1580
    %v1626 = vpop.f32.mrb[0].mxu0
    %v1627 = vadd.f32 0.0, %v1626
    %v1628 = vpop.f32.mrb[0].mxu0
    %v1629 = vadd.f32 0.0, %v1628
    %v1630 = vpop.f32.mrb[0].mxu0
    %v1631 = vadd.f32 0.0, %v1630
    %v1632 = vpop.f32.mrb[0].mxu0
    %v1633 = vadd.f32 0.0, %v1632
    %1634 = vdwg.mxu0
    %v1635 = vadd.f32 %v733, %v1617
    %v1636 = vadd.f32 %v735, %v1619
    %v1637 = vadd.f32 %v737, %v1621
    %v1638 = vadd.f32 %v739, %v1623
    %v1639 = vadd.f32 %v743, %v1627
    %v1640 = vadd.f32 %v745, %v1629
    %v1641 = vadd.f32 %v747, %v1631
    %v1642 = vadd.f32 %v749, %v1633
    %v1643 = vmul.f32 %v1635, %v488
    %v1644 = vmul.f32 %v1636, %v489
    %v1645 = vmul.f32 %v1637, %v490
    %v1646 = vmul.f32 %v1638, %v491
    %v1647 = vmul.f32 %v1639, %v488
    %v1648 = vmul.f32 %v1640, %v489
    %v1649 = vmul.f32 %v1641, %v490
    %v1650 = vmul.f32 %v1642, %v491
    %v1651 = vpack.c.bf16 %v1645, %v1643
    %v1652 = vpack.c.bf16 %v1646, %v1644
    %v1653 = vpack.c.bf16 %v1649, %v1647
    %v1654 = vpack.c.bf16 %v1650, %v1648
    %1655 = vmatprep.subr.bf16.mxu0 0
    %1656 = vmatpush1.bf16.msra.mxu0 %v1094
    %1657 = vmatprep.subr.bf16.mxu0 0
    %1658 = vmatpush1.bf16.msra.mxu0 %v1095
    %1659 = vmatprep.subr.bf16.mxu0 0
    %1660 = vmatpush1.bf16.msra.mxu0 %v1096
    %1661 = vmatprep.subr.bf16.mxu0 0
    %1662 = vmatpush1.bf16.msra.mxu0 %v1097
    %1663 = vmatprep.subr.bf16.mxu0 0
    %1664 = vmatpush1.bf16.msra.mxu0 %v1098
    %1665 = vmatprep.subr.bf16.mxu0 0
    %1666 = vmatpush1.bf16.msra.mxu0 %v1099
    %1667 = vmatprep.subr.bf16.mxu0 0
    %1668 = vmatpush1.bf16.msra.mxu0 %v1100
    %1669 = vmatprep.subr.bf16.mxu0 0
    %1670 = vmatpush1.bf16.msra.mxu0 %v1101
    %1671 = vmatprep.subr.bf16.mxu0 0
    %1672 = vmatpush1.bf16.msra.mxu0 %v1102
    %1673 = vmatprep.subr.bf16.mxu0 0
    %1674 = vmatpush1.bf16.msra.mxu0 %v1103
    %1675 = vmatprep.subr.bf16.mxu0 0
    %1676 = vmatpush1.bf16.msra.mxu0 %v1104
    %1677 = vmatprep.subr.bf16.mxu0 0
    %1678 = vmatpush1.bf16.msra.mxu0 %v1105
    %1679 = vmatprep.subr.bf16.mxu0 0
    %1680 = vmatpush1.bf16.msra.mxu0 %v1106
    %1681 = vmatprep.subr.bf16.mxu0 0
    %1682 = vmatpush1.bf16.msra.mxu0 %v1107
    %1683 = vmatprep.subr.bf16.mxu0 0
    %1684 = vmatpush1.bf16.msra.mxu0 %v1108
    %1685 = vmatprep.subr.bf16.mxu0 0
    %1686 = vmatpush1.bf16.msra.mxu0 %v1109
    %1687 = vmatprep.mubr.bf16.mxu0 %v1652
    %1688 = vmatmul.mubr.bf16.gmra.mrb[0].mxu0 %v1651
    %v1689 = vpop.f32.mrb[0].mxu0
    %v1690 = vadd.f32 %v496, %v1689
    %v1691 = vpop.f32.mrb[0].mxu0
    %v1692 = vpop.f32.mrb[0].mxu0
    %v1693 = vadd.f32 %v497, %v1692
    %v1694 = vpop.f32.mrb[0].mxu0
    %1695 = vmatprep.mubr.bf16.mxu0 %v1654
    %1696 = vmatmul.mubr.bf16.gmra.mrb[0].mxu0 %v1653
    %v1697 = vpop.f32.mrb[0].mxu0
    %v1698 = vadd.f32 %v496, %v1697
    %v1699 = vpop.f32.mrb[0].mxu0
    %v1700 = vpop.f32.mrb[0].mxu0
    %v1701 = vadd.f32 %v497, %v1700
    %v1702 = vpop.f32.mrb[0].mxu0
    %1703 = vdwg.mxu0
    %v1704 = vtanh.pop %v1690
    %v1705 = vtanh.pop %v1693
    %v1706 = vtanh.pop %v1698
    %v1707 = vtanh.pop %v1701
    %v1708 = vmul.f32 %v1285, %v530
    %v1709 = vmul.f32 %v1287, %v531
    %v1710 = vmul.f32 %v1289, %v532
    %v1711 = vmul.f32 %v1291, %v533
    %v1712 = vsub.f32 1.0, %v1285
    %v1713 = vsub.f32 1.0, %v1287
    %v1714 = vsub.f32 1.0, %v1289
    %v1715 = vsub.f32 1.0, %v1291
    %v1716 = vmul.f32 %v1712, %v1704
    %v1717 = vmul.f32 %v1713, %v1705
    %v1718 = vmul.f32 %v1714, %v1706
    %v1719 = vmul.f32 %v1715, %v1707
    %v1720 = vadd.f32 %v1708, %v1716
    %v1721 = vadd.f32 %v1709, %v1717
    %v1722 = vadd.f32 %v1710, %v1718
    %v1723 = vadd.f32 %v1711, %v1719
    %1724 = vst.msk [vmem:[#allocation2] sm:$0xff] %vm376, %v1720
    %1725 = vst.msk [vmem:[#allocation2 + $0x8] sm:$0xff] %vm376, %v1721
    %1726 = vst.msk [vmem:[#allocation2 + $0x10] sm:$0xff] %vm376, %v1722
    %1727 = vst.msk [vmem:[#allocation2 + $0x18] sm:$0xff] %vm376, %v1723
    // Predicated region
    $region46: #{agcrn_cell_pallas.1} parent=1 // pred_check
      _
    $region47: #{agcrn_cell_pallas.1} parent=1 // pred_check_branch
      %1729 = sbr.rel (0) target = $region49
    $region48: #{agcrn_cell_pallas.1} parent=1 // pred_region
      %s1731 = ssub.s32 512, 512
      %1732 = vsyncadd [#allocation3], %s1731
      %s1733 = sshll.u32 [#allocation2], 4
      %s1734 = int_to_ptr.vmem [resolvable:$true] %s1733
      %1739 = dma.vmem_to_hbm [thread:$0]  %s1734, 512, %s11, [#allocation3], 128, 128, 8
    $region49: #{agcrn_cell_pallas.1} parent=1 // pred_fallthru
      _
    // Predicated region
    $region50: #{agcrn_cell_pallas.1} parent=1 // pred_check
      _
    $region51: #{agcrn_cell_pallas.1} parent=1 // pred_check_branch
      %1741 = sbr.rel (0) target = $region53
    $region52: #{agcrn_cell_pallas.1} parent=1 // pred_region
      %1742 = dma.done [#allocation3], 512
    $region53: #{agcrn_cell_pallas.1} parent=1 // pred_fallthru
      _
    %1743 = vsyncpa [#allocation3], 1

</llo_original>
